<compile_context>
chip_gen: v7x
topology: tpu7x:2x2x1
jax: 0.10.0
libtpu: 0.0.40
codegen_flags: <defaults>
</compile_context>

<pallas_src>
import math

import jax
import jax.numpy as jnp
from jax.experimental import pallas as pl
from jax.experimental.pallas import tpu as pltpu

# ---------------- config (small synthetic BERT) ----------------
VOCAB = 64
MAX_POS = 16
TYPE_VOCAB = 2
HIDDEN = 32                    # args.bert_hidden
NUM_HEADS = 4
HEAD_DIM = HIDDEN // NUM_HEADS
INTERMEDIATE = 4 * HIDDEN
NUM_LAYERS = 4
CLASSES = 3                    # args.classes
BATCH = 2
SEQ = 8
LN_EPS = 1e-12
ATTN_SCALE = 1.0 / math.sqrt(HEAD_DIM)

# row layout of the packed per-layer vector operand (L, 8, H)
_ROW_BO, _ROW_LN1G, _ROW_LN1B, _ROW_B2, _ROW_LN2G, _ROW_LN2B = range(6)


def _layernorm(h, g, b):
    mu = jnp.mean(h, axis=-1, keepdims=True)
    var = jnp.mean((h - mu) ** 2, axis=-1, keepdims=True)
    return (h - mu) * jax.lax.rsqrt(var + LN_EPS) * g + b


# ---------------- fused whole-model kernel ----------------
def bert_fused_kernel(emb_ref, mask_ref, emb_ln_ref,
                      wqkv_ref, bqkv_ref, wo_ref, w1_ref, b1_ref, w2_ref,
                      vecs_ref, l0w_ref, l0b_ref,
                      logits_ref, x_sc):
    l = pl.program_id(0)
    B, _, S = mask_ref.shape
    H = x_sc.shape[-1]
    dh = H // NUM_HEADS

    # ---- first grid step: embedding LayerNorm + classifier-bias init ----
    @pl.when(l == 0)
    def _():
        x_sc[...] = _layernorm(emb_ref[...],
                               emb_ln_ref[0:1, :], emb_ln_ref[1:2, :])
        logits_ref[...] = jnp.broadcast_to(l0b_ref[...], logits_ref.shape)

    x = x_sc[...]                                         # (B*S, H), f32, VMEM-resident

    # packed per-layer vectors: (8, H) tile, rows sliced statically (cheap sublane selects)
    vecs = vecs_ref[0]
    bo = vecs[_ROW_BO:_ROW_BO + 1, :]
    ln1_g = vecs[_ROW_LN1G:_ROW_LN1G + 1, :]
    ln1_b = vecs[_ROW_LN1B:_ROW_LN1B + 1, :]
    b2 = vecs[_ROW_B2:_ROW_B2 + 1, :]
    ln2_g = vecs[_ROW_LN2G:_ROW_LN2G + 1, :]
    ln2_b = vecs[_ROW_LN2B:_ROW_LN2B + 1, :]

    # additive attention mask, broadcast ONCE (hoisted out of the per-head loop)
    mask_b = jnp.broadcast_to(mask_ref[...], (B, S, S))   # (B, 1, S) -> (B, S, S)

    # ---- fused QKV projection: one MXU pass, lane width 3H ----
    qkv = jnp.dot(x, wqkv_ref[0], preferred_element_type=jnp.float32) + bqkv_ref[0]

    # ---- multi-head self-attention (per-head batched einsum; S=8 so no online
    #      softmax needed; softmax denom via approx reciprocal on the EUP) ----
    ctx_heads = []
    for head in range(NUM_HEADS):
        q = qkv[:, head * dh:(head + 1) * dh].reshape(B, S, dh)
        k = qkv[:, H + head * dh:H + (head + 1) * dh].reshape(B, S, dh)
        v = qkv[:, 2 * H + head * dh:2 * H + (head + 1) * dh].reshape(B, S, dh)
        s = jnp.einsum("bqd,bkd->bqk", q, k,
                       preferred_element_type=jnp.float32) * ATTN_SCALE + mask_b
        m = jnp.max(s, axis=-1, keepdims=True)
        p = jnp.exp(s - m)
        p = p * pl.reciprocal(jnp.sum(p, axis=-1, keepdims=True), approx=True)
        ctx = jnp.einsum("bqk,bkd->bqd", p, v, preferred_element_type=jnp.float32)
        ctx_heads.append(ctx.reshape(B * S, dh))
    ctx = jnp.concatenate(ctx_heads, axis=-1)             # (B*S, H)

    # ---- attention output projection + Add & LayerNorm ----
    attn_out = jnp.dot(ctx, wo_ref[0], preferred_element_type=jnp.float32) + bo
    x = _layernorm(x + attn_out, ln1_g, ln1_b)

    # ---- FFN (gelu) + Add & LayerNorm ----
    hmid = jnp.dot(x, w1_ref[0], preferred_element_type=jnp.float32) + b1_ref[0]
    hmid = jax.nn.gelu(hmid, approximate=True)
    ffn = jnp.dot(hmid, w2_ref[0], preferred_element_type=jnp.float32) + b2
    x = _layernorm(x + ffn, ln2_g, ln2_b)

    x_sc[...] = x                                         # hidden state stays in VMEM

    # ---- classifier contribution of this layer:
    #      logits += CLS(x_l) @ l0_w[(L-1-l)*H:(L-l)*H]  (weight pre-stacked per layer)
    cls = x.reshape(B, S, H)[:, 0, :]                     # (B, H) CLS rows
    logits_ref[...] += jnp.dot(cls, l0w_ref[0], preferred_element_type=jnp.float32)


# ---------------- parameter init (deterministic, synthetic) ----------------
def init_params(key):
    keys = jax.random.split(key, 8)
    L, H, I = NUM_LAYERS, HIDDEN, INTERMEDIATE

    def normal(k, shape, std=0.02):
        return std * jax.random.normal(k, shape, jnp.float32)

    return {
        "word_emb": normal(keys[0], (VOCAB, H)),
        "pos_emb": normal(keys[1], (MAX_POS, H)),
        "type_emb": normal(keys[2], (TYPE_VOCAB, H)),
        "emb_ln_g": jnp.ones((1, H), jnp.float32),
        "emb_ln_b": jnp.zeros((1, H), jnp.float32),
        # per-layer weights stacked along a leading layer axis; QKV fused as (H, 3H)
        "wqkv": normal(keys[3], (L, H, 3 * H)),
        "bqkv": jnp.zeros((L, 1, 3 * H), jnp.float32),
        "wo": normal(keys[4], (L, H, H)),
        "bo": jnp.zeros((L, 1, H), jnp.float32),
        "ln1_g": jnp.ones((L, 1, H), jnp.float32),
        "ln1_b": jnp.zeros((L, 1, H), jnp.float32),
        "w1": normal(keys[5], (L, H, I)),
        "b1": jnp.zeros((L, 1, I), jnp.float32),
        "w2": normal(keys[6], (L, I, H)),
        "b2": jnp.zeros((L, 1, H), jnp.float32),
        "ln2_g": jnp.ones((L, 1, H), jnp.float32),
        "ln2_b": jnp.zeros((L, 1, H), jnp.float32),
        # classifier: Linear(4H, CLASSES); rows ordered [vec1 | vec2 | vec3 | vec4]
        "l0_w": normal(keys[7], (4 * H, CLASSES)),
        "l0_b": jnp.zeros((1, CLASSES), jnp.float32),
    }


# ---------------- forward pass ----------------
def bert_classifier_forward(params, ids, attention_mask, token_type_ids):
    B, S = ids.shape
    H, L = HIDDEN, NUM_LAYERS

    # embedding gathers + sum stay in XLA (glue); their LayerNorm runs in-kernel.
    we = jnp.take(params["word_emb"], ids, axis=0)               # (B, S, H)
    pe = params["pos_emb"][:S][None, :, :]                       # (1, S, H)
    te = jnp.take(params["type_emb"], token_type_ids, axis=0)    # (B, S, H)
    emb = (we + pe + te).reshape(B * S, H)

    # HF-style additive attention mask, (B, 1, S); broadcast over heads in-kernel.
    ext_mask = ((1.0 - attention_mask.astype(jnp.float32)) * -10000.0)[:, None, :]

    # Pack the two embedding-LN vectors into one operand (2, H).
    emb_ln = jnp.concatenate([params["emb_ln_g"], params["emb_ln_b"]], axis=0)

    # Pack the six per-layer (1, H) vectors into one operand (L, 8, H)
    # (rows: bo, ln1_g, ln1_b, b2, ln2_g, ln2_b, pad, pad).
    vecs = jnp.concatenate(
        [params["bo"], params["ln1_g"], params["ln1_b"],
         params["b2"], params["ln2_g"], params["ln2_b"],
         jnp.zeros((L, 2, H), jnp.float32)], axis=1)             # (L, 8, H)

    # Classifier weight re-stacked per layer: vec_j = hidden_states[-j] is layer
    # (L - j), so layer l consumes block (L - 1 - l) of l0_w -> reverse order.
    l0w_stacked = params["l0_w"].reshape(L, H, CLASSES)[::-1]    # (L, H, CLASSES)

    def layer_spec(shape):
        return pl.BlockSpec((1,) + shape, lambda l: (l, 0, 0))

    grid_spec = pltpu.PrefetchScalarGridSpec(
        num_scalar_prefetch=0,
        grid=(L,),
        in_specs=[
            pl.BlockSpec((B * S, H), lambda l: (0, 0)),            # emb (post-sum)
            pl.BlockSpec((B, 1, S), lambda l: (0, 0, 0)),          # additive mask
            pl.BlockSpec((2, H), lambda l: (0, 0)),                # emb LN gamma/beta
            layer_spec((H, 3 * H)),                                # wqkv
            layer_spec((1, 3 * H)),                                # bqkv
            layer_spec((H, H)),                                    # wo
            layer_spec((H, INTERMEDIATE)),                         # w1
            layer_spec((1, INTERMEDIATE)),                         # b1
            layer_spec((INTERMEDIATE, H)),                         # w2
            layer_spec((8, H)),                                    # packed per-layer vectors
            layer_spec((H, CLASSES)),                              # per-layer l0_w block
            pl.BlockSpec((1, CLASSES), lambda l: (0, 0)),          # l0 bias
        ],
        out_specs=pl.BlockSpec((B, CLASSES), lambda l: (0, 0)),    # logits accumulator
        scratch_shapes=[pltpu.VMEM((B * S, H), jnp.float32)],      # resident hidden state
    )

    logits = pl.pallas_call(
        bert_fused_kernel,
        out_shape=jax.ShapeDtypeStruct((B, CLASSES), jnp.float32),
        grid_spec=grid_spec,
        compiler_params=pltpu.CompilerParams(
            dimension_semantics=("arbitrary",)),
    )(emb, ext_mask, emb_ln,
      params["wqkv"], params["bqkv"], params["wo"],
      params["w1"], params["b1"], params["w2"],
      vecs, l0w_stacked, params["l0_b"])
    return logits


if __name__ == "__main__":
    key = jax.random.PRNGKey(0)
    pkey, ikey = jax.random.split(key)
    params = init_params(pkey)

    ids = jax.random.randint(ikey, (BATCH, SEQ), 0, VOCAB, dtype=jnp.int32)
    attention_mask = jnp.ones((BATCH, SEQ), dtype=jnp.int32)
    # mask out the last two tokens of batch element 1 to exercise masking
    attention_mask = attention_mask.at[1, -2:].set(0)
    token_type_ids = jnp.zeros((BATCH, SEQ), dtype=jnp.int32)

    fwd = jax.jit(bert_classifier_forward)
    logits = fwd(params, ids, attention_mask, token_type_ids)
    jax.block_until_ready(logits)
    assert logits.shape == (BATCH, CLASSES)
    assert bool(jnp.all(jnp.isfinite(logits)))
    print("KERNEL_OK")
</pallas_src>

<mosaic_0001>
module attributes {stable_mosaic.version = 11 : i64} {
  func.func @bert_fused_kernel(%arg0: i32, %arg1: memref<16x32xf32, #tpu.memory_space<vmem>>, %arg2: memref<2x1x8xf32, #tpu.memory_space<vmem>>, %arg3: memref<2x32xf32, #tpu.memory_space<vmem>>, %arg4: memref<1x32x96xf32, #tpu.memory_space<vmem>>, %arg5: memref<1x1x96xf32, #tpu.memory_space<vmem>>, %arg6: memref<1x32x32xf32, #tpu.memory_space<vmem>>, %arg7: memref<1x32x128xf32, #tpu.memory_space<vmem>>, %arg8: memref<1x1x128xf32, #tpu.memory_space<vmem>>, %arg9: memref<1x128x32xf32, #tpu.memory_space<vmem>>, %arg10: memref<1x8x32xf32, #tpu.memory_space<vmem>>, %arg11: memref<1x32x3xf32, #tpu.memory_space<vmem>>, %arg12: memref<1x3xf32, #tpu.memory_space<vmem>>, %arg13: memref<2x3xf32, #tpu.memory_space<vmem>>, %arg14: memref<16x32xf32, #tpu.memory_space<vmem>>) attributes {dimension_semantics = [#tpu.dimension_semantics<arbitrary>], iteration_bounds = array<i64: 4>, scalar_prefetch = 0 : i64, scratch_operands = 1 : i64, tpu.core_type = #tpu.core_type<tc>, window_params = [{pipeline_mode = #tpu.pipeline_mode<synchronous>, transform_indices = @transform_0, window_bounds = array<i64: 16, 32>}, {pipeline_mode = #tpu.pipeline_mode<synchronous>, transform_indices = @transform_1, window_bounds = array<i64: 2, 1, 8>}, {pipeline_mode = #tpu.pipeline_mode<synchronous>, transform_indices = @transform_2, window_bounds = array<i64: 2, 32>}, {transform_indices = @transform_3, window_bounds = array<i64: 1, 32, 96>}, {transform_indices = @transform_4, window_bounds = array<i64: 1, 1, 96>}, {transform_indices = @transform_5, window_bounds = array<i64: 1, 32, 32>}, {transform_indices = @transform_6, window_bounds = array<i64: 1, 32, 128>}, {transform_indices = @transform_7, window_bounds = array<i64: 1, 1, 128>}, {transform_indices = @transform_8, window_bounds = array<i64: 1, 128, 32>}, {transform_indices = @transform_9, window_bounds = array<i64: 1, 8, 32>}, {transform_indices = @transform_10, window_bounds = array<i64: 1, 32, 3>}, {pipeline_mode = #tpu.pipeline_mode<synchronous>, transform_indices = @transform_11, window_bounds = array<i64: 1, 3>}, {pipeline_mode = #tpu.pipeline_mode<synchronous>, transform_indices = @transform_12, window_bounds = array<i64: 2, 3>}]} {
    %c0_i32 = arith.constant 0 : i32
    %0 = arith.cmpi eq, %arg0, %c0_i32 : i32
    %1 = arith.extui %0 : i1 to i32
    %c0_i32_0 = arith.constant 0 : i32
    %2 = arith.cmpi ne, %1, %c0_i32_0 : i32
    scf.if %2 {
      %c0_73 = arith.constant 0 : index
      %c0_74 = arith.constant 0 : index
      %197 = vector.load %arg1[%c0_73, %c0_74] : memref<16x32xf32, #tpu.memory_space<vmem>>, vector<16x32xf32>
      %c0_75 = arith.constant 0 : index
      %c0_76 = arith.constant 0 : index
      %198 = vector.load %arg3[%c0_75, %c0_76] : memref<2x32xf32, #tpu.memory_space<vmem>>, vector<1x32xf32>
      %c1 = arith.constant 1 : index
      %c0_77 = arith.constant 0 : index
      %199 = vector.load %arg3[%c1, %c0_77] : memref<2x32xf32, #tpu.memory_space<vmem>>, vector<1x32xf32>
      %cst_78 = arith.constant dense<0.000000e+00> : vector<16xf32>
      %200 = vector.multi_reduction <add>, %197, %cst_78 [1] : vector<16x32xf32> to vector<16xf32>
      %201 = vector.shape_cast %200 : vector<16xf32> to vector<16x1xf32>
      %cst_79 = arith.constant 3.200000e+01 : f32
      %202 = vector.broadcast %cst_79 : f32 to vector<16x1xf32>
      %203 = arith.divf %201, %202 : vector<16x1xf32>
      %204 = vector.broadcast %203 : vector<16x1xf32> to vector<16x32xf32>
      %205 = arith.subf %197, %204 : vector<16x32xf32>
      %206 = arith.mulf %205, %205 : vector<16x32xf32>
      %cst_80 = arith.constant dense<0.000000e+00> : vector<16xf32>
      %207 = vector.multi_reduction <add>, %206, %cst_80 [1] : vector<16x32xf32> to vector<16xf32>
      %208 = vector.shape_cast %207 : vector<16xf32> to vector<16x1xf32>
      %cst_81 = arith.constant 3.200000e+01 : f32
      %209 = vector.broadcast %cst_81 : f32 to vector<16x1xf32>
      %210 = arith.divf %208, %209 : vector<16x1xf32>
      %211 = vector.broadcast %203 : vector<16x1xf32> to vector<16x32xf32>
      %212 = arith.subf %197, %211 : vector<16x32xf32>
      %cst_82 = arith.constant 9.99999996E-13 : f32
      %213 = vector.broadcast %cst_82 : f32 to vector<16x1xf32>
      %214 = arith.addf %210, %213 : vector<16x1xf32>
      %215 = math.rsqrt %214 : vector<16x1xf32>
      %216 = vector.broadcast %215 : vector<16x1xf32> to vector<16x32xf32>
      %217 = arith.mulf %212, %216 : vector<16x32xf32>
      %218 = vector.broadcast %198 : vector<1x32xf32> to vector<16x32xf32>
      %219 = arith.mulf %217, %218 : vector<16x32xf32>
      %220 = vector.broadcast %199 : vector<1x32xf32> to vector<16x32xf32>
      %221 = arith.addf %219, %220 : vector<16x32xf32>
      %c0_83 = arith.constant 0 : index
      %c0_84 = arith.constant 0 : index
      %222 = vector.load %arg14[%c0_83, %c0_84] : memref<16x32xf32, #tpu.memory_space<vmem>>, vector<16x32xf32>
      tpu.vector_store %arg14[%c0_83, %c0_84], %221 {strides = array<i32>} : memref<16x32xf32, #tpu.memory_space<vmem>>, vector<16x32xf32>,
      %c0_85 = arith.constant 0 : index
      %c0_86 = arith.constant 0 : index
      %223 = vector.load %arg12[%c0_85, %c0_86] : memref<1x3xf32, #tpu.memory_space<vmem>>, vector<1x3xf32>
      %224 = vector.shape_cast %223 : vector<1x3xf32> to vector<1x3xf32>
      %225 = vector.broadcast %224 : vector<1x3xf32> to vector<2x3xf32>
      %c0_87 = arith.constant 0 : index
      %c0_88 = arith.constant 0 : index
      %226 = vector.load %arg13[%c0_87, %c0_88] : memref<2x3xf32, #tpu.memory_space<vmem>>, vector<2x3xf32>
      tpu.vector_store %arg13[%c0_87, %c0_88], %225 {strides = array<i32>} : memref<2x3xf32, #tpu.memory_space<vmem>>, vector<2x3xf32>,
    } else {
    }
    %c0 = arith.constant 0 : index
    %c0_1 = arith.constant 0 : index
    %3 = vector.load %arg14[%c0, %c0_1] : memref<16x32xf32, #tpu.memory_space<vmem>>, vector<16x32xf32>
    %c0_2 = arith.constant 0 : index
    %c0_3 = arith.constant 0 : index
    %c0_4 = arith.constant 0 : index
    %4 = vector.load %arg10[%c0_2, %c0_3, %c0_4] : memref<1x8x32xf32, #tpu.memory_space<vmem>>, vector<1x8x32xf32>
    %5 = vector.shape_cast %4 : vector<1x8x32xf32> to vector<8x32xf32>
    %6 = vector.extract_strided_slice %5 {offsets = [0, 0], sizes = [1, 32], strides = [1, 1]} : vector<8x32xf32> to vector<1x32xf32>
    %7 = vector.extract_strided_slice %5 {offsets = [1, 0], sizes = [1, 32], strides = [1, 1]} : vector<8x32xf32> to vector<1x32xf32>
    %8 = vector.extract_strided_slice %5 {offsets = [2, 0], sizes = [1, 32], strides = [1, 1]} : vector<8x32xf32> to vector<1x32xf32>
    %9 = vector.extract_strided_slice %5 {offsets = [3, 0], sizes = [1, 32], strides = [1, 1]} : vector<8x32xf32> to vector<1x32xf32>
    %10 = vector.extract_strided_slice %5 {offsets = [4, 0], sizes = [1, 32], strides = [1, 1]} : vector<8x32xf32> to vector<1x32xf32>
    %11 = vector.extract_strided_slice %5 {offsets = [5, 0], sizes = [1, 32], strides = [1, 1]} : vector<8x32xf32> to vector<1x32xf32>
    %c0_5 = arith.constant 0 : index
    %c0_6 = arith.constant 0 : index
    %c0_7 = arith.constant 0 : index
    %12 = vector.load %arg2[%c0_5, %c0_6, %c0_7] : memref<2x1x8xf32, #tpu.memory_space<vmem>>, vector<2x1x8xf32>
    %13 = vector.shape_cast %12 : vector<2x1x8xf32> to vector<2x1x8xf32>
    %14 = vector.broadcast %13 : vector<2x1x8xf32> to vector<2x8x8xf32>
    %c0_8 = arith.constant 0 : index
    %c0_9 = arith.constant 0 : index
    %c0_10 = arith.constant 0 : index
    %15 = vector.load %arg4[%c0_8, %c0_9, %c0_10] : memref<1x32x96xf32, #tpu.memory_space<vmem>>, vector<1x32x96xf32>
    %16 = vector.shape_cast %15 : vector<1x32x96xf32> to vector<32x96xf32>
    %cst = arith.constant dense<0.000000e+00> : vector<16x96xf32>
    %17 = tpu.matmul %3, %16, %cst {dimension_numbers = #tpu.dot_dimension_numbers<[1], [0], [0], [1], [0, 0, 1, 1], [], []>} : vector<16x32xf32>, vector<32x96xf32>, vector<16x96xf32> -> vector<16x96xf32>
    %c0_11 = arith.constant 0 : index
    %c0_12 = arith.constant 0 : index
    %c0_13 = arith.constant 0 : index
    %18 = vector.load %arg5[%c0_11, %c0_12, %c0_13] : memref<1x1x96xf32, #tpu.memory_space<vmem>>, vector<1x1x96xf32>
    %19 = vector.shape_cast %18 : vector<1x1x96xf32> to vector<1x96xf32>
    %20 = vector.broadcast %19 : vector<1x96xf32> to vector<16x96xf32>
    %21 = arith.addf %17, %20 : vector<16x96xf32>
    %22 = vector.extract_strided_slice %21 {offsets = [0, 0], sizes = [16, 8], strides = [1, 1]} : vector<16x96xf32> to vector<16x8xf32>
    %23 = vector.shape_cast %22 : vector<16x8xf32> to vector<2x8x8xf32>
    %24 = vector.extract_strided_slice %21 {offsets = [0, 32], sizes = [16, 8], strides = [1, 1]} : vector<16x96xf32> to vector<16x8xf32>
    %25 = vector.shape_cast %24 : vector<16x8xf32> to vector<2x8x8xf32>
    %26 = vector.extract_strided_slice %21 {offsets = [0, 64], sizes = [16, 8], strides = [1, 1]} : vector<16x96xf32> to vector<16x8xf32>
    %27 = vector.shape_cast %26 : vector<16x8xf32> to vector<2x8x8xf32>
    "tpu.trace_start"() <{level = 10 : i32, message = "bqd,bkd->bqk"}> : () -> ()
    %cst_14 = arith.constant dense<0.000000e+00> : vector<2x8x8xf32>
    %28 = tpu.matmul %23, %25, %cst_14 {dimension_numbers = #tpu.dot_dimension_numbers<[2], [2], [1], [1], [0, 0, 0, 1, 1, 1], [0], [0]>} : vector<2x8x8xf32>, vector<2x8x8xf32>, vector<2x8x8xf32> -> vector<2x8x8xf32>
    "tpu.trace_stop"() : () -> ()
    %cst_15 = arith.constant 0.353553385 : f32
    %29 = vector.broadcast %cst_15 : f32 to vector<2x8x8xf32>
    %30 = arith.mulf %28, %29 : vector<2x8x8xf32>
    %31 = arith.addf %30, %14 : vector<2x8x8xf32>
    %cst_16 = arith.constant dense<0xFF800000> : vector<2x8xf32>
    %32 = vector.multi_reduction <maximumf>, %31, %cst_16 [2] : vector<2x8x8xf32> to vector<2x8xf32>
    %33 = vector.shape_cast %32 : vector<2x8xf32> to vector<2x8x1xf32>
    %34 = vector.broadcast %33 : vector<2x8x1xf32> to vector<2x8x8xf32>
    %35 = arith.subf %31, %34 : vector<2x8x8xf32>
    %36 = math.exp %35 : vector<2x8x8xf32>
    %cst_17 = arith.constant dense<0.000000e+00> : vector<2x8xf32>
    %37 = vector.multi_reduction <add>, %36, %cst_17 [2] : vector<2x8x8xf32> to vector<2x8xf32>
    %38 = vector.shape_cast %37 : vector<2x8xf32> to vector<2x8x1xf32>
    %39 = tpu.reciprocal %38 {approx = true} : vector<2x8x1xf32> -> vector<2x8x1xf32>
    %40 = vector.broadcast %39 : vector<2x8x1xf32> to vector<2x8x8xf32>
    %41 = arith.mulf %36, %40 : vector<2x8x8xf32>
    "tpu.trace_start"() <{level = 10 : i32, message = "bqk,bkd->bqd"}> : () -> ()
    %cst_18 = arith.constant dense<0.000000e+00> : vector<2x8x8xf32>
    %42 = tpu.matmul %41, %27, %cst_18 {dimension_numbers = #tpu.dot_dimension_numbers<[2], [1], [1], [2], [0, 0, 0, 1, 1, 2], [0], [0]>} : vector<2x8x8xf32>, vector<2x8x8xf32>, vector<2x8x8xf32> -> vector<2x8x8xf32>
    "tpu.trace_stop"() : () -> ()
    %43 = vector.shape_cast %42 : vector<2x8x8xf32> to vector<16x8xf32>
    %44 = vector.extract_strided_slice %21 {offsets = [0, 8], sizes = [16, 8], strides = [1, 1]} : vector<16x96xf32> to vector<16x8xf32>
    %45 = vector.shape_cast %44 : vector<16x8xf32> to vector<2x8x8xf32>
    %46 = vector.extract_strided_slice %21 {offsets = [0, 40], sizes = [16, 8], strides = [1, 1]} : vector<16x96xf32> to vector<16x8xf32>
    %47 = vector.shape_cast %46 : vector<16x8xf32> to vector<2x8x8xf32>
    %48 = vector.extract_strided_slice %21 {offsets = [0, 72], sizes = [16, 8], strides = [1, 1]} : vector<16x96xf32> to vector<16x8xf32>
    %49 = vector.shape_cast %48 : vector<16x8xf32> to vector<2x8x8xf32>
    "tpu.trace_start"() <{level = 10 : i32, message = "bqd,bkd->bqk"}> : () -> ()
    %cst_19 = arith.constant dense<0.000000e+00> : vector<2x8x8xf32>
    %50 = tpu.matmul %45, %47, %cst_19 {dimension_numbers = #tpu.dot_dimension_numbers<[2], [2], [1], [1], [0, 0, 0, 1, 1, 1], [0], [0]>} : vector<2x8x8xf32>, vector<2x8x8xf32>, vector<2x8x8xf32> -> vector<2x8x8xf32>
    "tpu.trace_stop"() : () -> ()
    %cst_20 = arith.constant 0.353553385 : f32
    %51 = vector.broadcast %cst_20 : f32 to vector<2x8x8xf32>
    %52 = arith.mulf %50, %51 : vector<2x8x8xf32>
    %53 = arith.addf %52, %14 : vector<2x8x8xf32>
    %cst_21 = arith.constant dense<0xFF800000> : vector<2x8xf32>
    %54 = vector.multi_reduction <maximumf>, %53, %cst_21 [2] : vector<2x8x8xf32> to vector<2x8xf32>
    %55 = vector.shape_cast %54 : vector<2x8xf32> to vector<2x8x1xf32>
    %56 = vector.broadcast %55 : vector<2x8x1xf32> to vector<2x8x8xf32>
    %57 = arith.subf %53, %56 : vector<2x8x8xf32>
    %58 = math.exp %57 : vector<2x8x8xf32>
    %cst_22 = arith.constant dense<0.000000e+00> : vector<2x8xf32>
    %59 = vector.multi_reduction <add>, %58, %cst_22 [2] : vector<2x8x8xf32> to vector<2x8xf32>
    %60 = vector.shape_cast %59 : vector<2x8xf32> to vector<2x8x1xf32>
    %61 = tpu.reciprocal %60 {approx = true} : vector<2x8x1xf32> -> vector<2x8x1xf32>
    %62 = vector.broadcast %61 : vector<2x8x1xf32> to vector<2x8x8xf32>
    %63 = arith.mulf %58, %62 : vector<2x8x8xf32>
    "tpu.trace_start"() <{level = 10 : i32, message = "bqk,bkd->bqd"}> : () -> ()
    %cst_23 = arith.constant dense<0.000000e+00> : vector<2x8x8xf32>
    %64 = tpu.matmul %63, %49, %cst_23 {dimension_numbers = #tpu.dot_dimension_numbers<[2], [1], [1], [2], [0, 0, 0, 1, 1, 2], [0], [0]>} : vector<2x8x8xf32>, vector<2x8x8xf32>, vector<2x8x8xf32> -> vector<2x8x8xf32>
    "tpu.trace_stop"() : () -> ()
    %65 = vector.shape_cast %64 : vector<2x8x8xf32> to vector<16x8xf32>
    %66 = vector.extract_strided_slice %21 {offsets = [0, 16], sizes = [16, 8], strides = [1, 1]} : vector<16x96xf32> to vector<16x8xf32>
    %67 = vector.shape_cast %66 : vector<16x8xf32> to vector<2x8x8xf32>
    %68 = vector.extract_strided_slice %21 {offsets = [0, 48], sizes = [16, 8], strides = [1, 1]} : vector<16x96xf32> to vector<16x8xf32>
    %69 = vector.shape_cast %68 : vector<16x8xf32> to vector<2x8x8xf32>
    %70 = vector.extract_strided_slice %21 {offsets = [0, 80], sizes = [16, 8], strides = [1, 1]} : vector<16x96xf32> to vector<16x8xf32>
    %71 = vector.shape_cast %70 : vector<16x8xf32> to vector<2x8x8xf32>
    "tpu.trace_start"() <{level = 10 : i32, message = "bqd,bkd->bqk"}> : () -> ()
    %cst_24 = arith.constant dense<0.000000e+00> : vector<2x8x8xf32>
    %72 = tpu.matmul %67, %69, %cst_24 {dimension_numbers = #tpu.dot_dimension_numbers<[2], [2], [1], [1], [0, 0, 0, 1, 1, 1], [0], [0]>} : vector<2x8x8xf32>, vector<2x8x8xf32>, vector<2x8x8xf32> -> vector<2x8x8xf32>
    "tpu.trace_stop"() : () -> ()
    %cst_25 = arith.constant 0.353553385 : f32
    %73 = vector.broadcast %cst_25 : f32 to vector<2x8x8xf32>
    %74 = arith.mulf %72, %73 : vector<2x8x8xf32>
    %75 = arith.addf %74, %14 : vector<2x8x8xf32>
    %cst_26 = arith.constant dense<0xFF800000> : vector<2x8xf32>
    %76 = vector.multi_reduction <maximumf>, %75, %cst_26 [2] : vector<2x8x8xf32> to vector<2x8xf32>
    %77 = vector.shape_cast %76 : vector<2x8xf32> to vector<2x8x1xf32>
    %78 = vector.broadcast %77 : vector<2x8x1xf32> to vector<2x8x8xf32>
    %79 = arith.subf %75, %78 : vector<2x8x8xf32>
    %80 = math.exp %79 : vector<2x8x8xf32>
    %cst_27 = arith.constant dense<0.000000e+00> : vector<2x8xf32>
    %81 = vector.multi_reduction <add>, %80, %cst_27 [2] : vector<2x8x8xf32> to vector<2x8xf32>
    %82 = vector.shape_cast %81 : vector<2x8xf32> to vector<2x8x1xf32>
    %83 = tpu.reciprocal %82 {approx = true} : vector<2x8x1xf32> -> vector<2x8x1xf32>
    %84 = vector.broadcast %83 : vector<2x8x1xf32> to vector<2x8x8xf32>
    %85 = arith.mulf %80, %84 : vector<2x8x8xf32>
    "tpu.trace_start"() <{level = 10 : i32, message = "bqk,bkd->bqd"}> : () -> ()
    %cst_28 = arith.constant dense<0.000000e+00> : vector<2x8x8xf32>
    %86 = tpu.matmul %85, %71, %cst_28 {dimension_numbers = #tpu.dot_dimension_numbers<[2], [1], [1], [2], [0, 0, 0, 1, 1, 2], [0], [0]>} : vector<2x8x8xf32>, vector<2x8x8xf32>, vector<2x8x8xf32> -> vector<2x8x8xf32>
    "tpu.trace_stop"() : () -> ()
    %87 = vector.shape_cast %86 : vector<2x8x8xf32> to vector<16x8xf32>
    %88 = vector.extract_strided_slice %21 {offsets = [0, 24], sizes = [16, 8], strides = [1, 1]} : vector<16x96xf32> to vector<16x8xf32>
    %89 = vector.shape_cast %88 : vector<16x8xf32> to vector<2x8x8xf32>
    %90 = vector.extract_strided_slice %21 {offsets = [0, 56], sizes = [16, 8], strides = [1, 1]} : vector<16x96xf32> to vector<16x8xf32>
    %91 = vector.shape_cast %90 : vector<16x8xf32> to vector<2x8x8xf32>
    %92 = vector.extract_strided_slice %21 {offsets = [0, 88], sizes = [16, 8], strides = [1, 1]} : vector<16x96xf32> to vector<16x8xf32>
    %93 = vector.shape_cast %92 : vector<16x8xf32> to vector<2x8x8xf32>
    "tpu.trace_start"() <{level = 10 : i32, message = "bqd,bkd->bqk"}> : () -> ()
    %cst_29 = arith.constant dense<0.000000e+00> : vector<2x8x8xf32>
    %94 = tpu.matmul %89, %91, %cst_29 {dimension_numbers = #tpu.dot_dimension_numbers<[2], [2], [1], [1], [0, 0, 0, 1, 1, 1], [0], [0]>} : vector<2x8x8xf32>, vector<2x8x8xf32>, vector<2x8x8xf32> -> vector<2x8x8xf32>
    "tpu.trace_stop"() : () -> ()
    %cst_30 = arith.constant 0.353553385 : f32
    %95 = vector.broadcast %cst_30 : f32 to vector<2x8x8xf32>
    %96 = arith.mulf %94, %95 : vector<2x8x8xf32>
    %97 = arith.addf %96, %14 : vector<2x8x8xf32>
    %cst_31 = arith.constant dense<0xFF800000> : vector<2x8xf32>
    %98 = vector.multi_reduction <maximumf>, %97, %cst_31 [2] : vector<2x8x8xf32> to vector<2x8xf32>
    %99 = vector.shape_cast %98 : vector<2x8xf32> to vector<2x8x1xf32>
    %100 = vector.broadcast %99 : vector<2x8x1xf32> to vector<2x8x8xf32>
    %101 = arith.subf %97, %100 : vector<2x8x8xf32>
    %102 = math.exp %101 : vector<2x8x8xf32>
    %cst_32 = arith.constant dense<0.000000e+00> : vector<2x8xf32>
    %103 = vector.multi_reduction <add>, %102, %cst_32 [2] : vector<2x8x8xf32> to vector<2x8xf32>
    %104 = vector.shape_cast %103 : vector<2x8xf32> to vector<2x8x1xf32>
    %105 = tpu.reciprocal %104 {approx = true} : vector<2x8x1xf32> -> vector<2x8x1xf32>
    %106 = vector.broadcast %105 : vector<2x8x1xf32> to vector<2x8x8xf32>
    %107 = arith.mulf %102, %106 : vector<2x8x8xf32>
    "tpu.trace_start"() <{level = 10 : i32, message = "bqk,bkd->bqd"}> : () -> ()
    %cst_33 = arith.constant dense<0.000000e+00> : vector<2x8x8xf32>
    %108 = tpu.matmul %107, %93, %cst_33 {dimension_numbers = #tpu.dot_dimension_numbers<[2], [1], [1], [2], [0, 0, 0, 1, 1, 2], [0], [0]>} : vector<2x8x8xf32>, vector<2x8x8xf32>, vector<2x8x8xf32> -> vector<2x8x8xf32>
    "tpu.trace_stop"() : () -> ()
    %109 = vector.shape_cast %108 : vector<2x8x8xf32> to vector<16x8xf32>
    %110 = tpu.concatenate %43, %65, %87, %109 in 1 : vector<16x8xf32>, vector<16x8xf32>, vector<16x8xf32>, vector<16x8xf32> -> vector<16x32xf32>
    %c0_34 = arith.constant 0 : index
    %c0_35 = arith.constant 0 : index
    %c0_36 = arith.constant 0 : index
    %111 = vector.load %arg6[%c0_34, %c0_35, %c0_36] : memref<1x32x32xf32, #tpu.memory_space<vmem>>, vector<1x32x32xf32>
    %112 = vector.shape_cast %111 : vector<1x32x32xf32> to vector<32x32xf32>
    %cst_37 = arith.constant dense<0.000000e+00> : vector<16x32xf32>
    %113 = tpu.matmul %110, %112, %cst_37 {dimension_numbers = #tpu.dot_dimension_numbers<[1], [0], [0], [1], [0, 0, 1, 1], [], []>} : vector<16x32xf32>, vector<32x32xf32>, vector<16x32xf32> -> vector<16x32xf32>
    %114 = vector.broadcast %6 : vector<1x32xf32> to vector<16x32xf32>
    %115 = arith.addf %113, %114 : vector<16x32xf32>
    %116 = arith.addf %3, %115 : vector<16x32xf32>
    %cst_38 = arith.constant dense<0.000000e+00> : vector<16xf32>
    %117 = vector.multi_reduction <add>, %116, %cst_38 [1] : vector<16x32xf32> to vector<16xf32>
    %118 = vector.shape_cast %117 : vector<16xf32> to vector<16x1xf32>
    %cst_39 = arith.constant 3.200000e+01 : f32
    %119 = vector.broadcast %cst_39 : f32 to vector<16x1xf32>
    %120 = arith.divf %118, %119 : vector<16x1xf32>
    %121 = vector.broadcast %120 : vector<16x1xf32> to vector<16x32xf32>
    %122 = arith.subf %116, %121 : vector<16x32xf32>
    %123 = arith.mulf %122, %122 : vector<16x32xf32>
    %cst_40 = arith.constant dense<0.000000e+00> : vector<16xf32>
    %124 = vector.multi_reduction <add>, %123, %cst_40 [1] : vector<16x32xf32> to vector<16xf32>
    %125 = vector.shape_cast %124 : vector<16xf32> to vector<16x1xf32>
    %cst_41 = arith.constant 3.200000e+01 : f32
    %126 = vector.broadcast %cst_41 : f32 to vector<16x1xf32>
    %127 = arith.divf %125, %126 : vector<16x1xf32>
    %128 = vector.broadcast %120 : vector<16x1xf32> to vector<16x32xf32>
    %129 = arith.subf %116, %128 : vector<16x32xf32>
    %cst_42 = arith.constant 9.99999996E-13 : f32
    %130 = vector.broadcast %cst_42 : f32 to vector<16x1xf32>
    %131 = arith.addf %127, %130 : vector<16x1xf32>
    %132 = math.rsqrt %131 : vector<16x1xf32>
    %133 = vector.broadcast %132 : vector<16x1xf32> to vector<16x32xf32>
    %134 = arith.mulf %129, %133 : vector<16x32xf32>
    %135 = vector.broadcast %7 : vector<1x32xf32> to vector<16x32xf32>
    %136 = arith.mulf %134, %135 : vector<16x32xf32>
    %137 = vector.broadcast %8 : vector<1x32xf32> to vector<16x32xf32>
    %138 = arith.addf %136, %137 : vector<16x32xf32>
    %c0_43 = arith.constant 0 : index
    %c0_44 = arith.constant 0 : index
    %c0_45 = arith.constant 0 : index
    %139 = vector.load %arg7[%c0_43, %c0_44, %c0_45] : memref<1x32x128xf32, #tpu.memory_space<vmem>>, vector<1x32x128xf32>
    %140 = vector.shape_cast %139 : vector<1x32x128xf32> to vector<32x128xf32>
    %cst_46 = arith.constant dense<0.000000e+00> : vector<16x128xf32>
    %141 = tpu.matmul %138, %140, %cst_46 {dimension_numbers = #tpu.dot_dimension_numbers<[1], [0], [0], [1], [0, 0, 1, 1], [], []>} : vector<16x32xf32>, vector<32x128xf32>, vector<16x128xf32> -> vector<16x128xf32>
    %c0_47 = arith.constant 0 : index
    %c0_48 = arith.constant 0 : index
    %c0_49 = arith.constant 0 : index
    %142 = vector.load %arg8[%c0_47, %c0_48, %c0_49] : memref<1x1x128xf32, #tpu.memory_space<vmem>>, vector<1x1x128xf32>
    %143 = vector.shape_cast %142 : vector<1x1x128xf32> to vector<1x128xf32>
    %144 = vector.broadcast %143 : vector<1x128xf32> to vector<16x128xf32>
    %145 = arith.addf %141, %144 : vector<16x128xf32>
    %146 = arith.mulf %145, %145 : vector<16x128xf32>
    %147 = arith.mulf %145, %146 : vector<16x128xf32>
    %cst_50 = arith.constant 4.471500e-02 : f32
    %148 = vector.broadcast %cst_50 : f32 to vector<16x128xf32>
    %149 = arith.mulf %148, %147 : vector<16x128xf32>
    %150 = arith.addf %145, %149 : vector<16x128xf32>
    %cst_51 = arith.constant 0.797884583 : f32
    %151 = vector.broadcast %cst_51 : f32 to vector<16x128xf32>
    %152 = arith.mulf %151, %150 : vector<16x128xf32>
    %153 = math.tanh %152 : vector<16x128xf32>
    %cst_52 = arith.constant 1.000000e+00 : f32
    %154 = vector.broadcast %cst_52 : f32 to vector<16x128xf32>
    %155 = arith.addf %154, %153 : vector<16x128xf32>
    %cst_53 = arith.constant 5.000000e-01 : f32
    %156 = vector.broadcast %cst_53 : f32 to vector<16x128xf32>
    %157 = arith.mulf %156, %155 : vector<16x128xf32>
    %158 = arith.mulf %145, %157 : vector<16x128xf32>
    %c0_54 = arith.constant 0 : index
    %c0_55 = arith.constant 0 : index
    %c0_56 = arith.constant 0 : index
    %159 = vector.load %arg9[%c0_54, %c0_55, %c0_56] : memref<1x128x32xf32, #tpu.memory_space<vmem>>, vector<1x128x32xf32>
    %160 = vector.shape_cast %159 : vector<1x128x32xf32> to vector<128x32xf32>
    %cst_57 = arith.constant dense<0.000000e+00> : vector<16x32xf32>
    %161 = tpu.matmul %158, %160, %cst_57 {dimension_numbers = #tpu.dot_dimension_numbers<[1], [0], [0], [1], [0, 0, 1, 1], [], []>} : vector<16x128xf32>, vector<128x32xf32>, vector<16x32xf32> -> vector<16x32xf32>
    %162 = vector.broadcast %9 : vector<1x32xf32> to vector<16x32xf32>
    %163 = arith.addf %161, %162 : vector<16x32xf32>
    %164 = arith.addf %138, %163 : vector<16x32xf32>
    %cst_58 = arith.constant dense<0.000000e+00> : vector<16xf32>
    %165 = vector.multi_reduction <add>, %164, %cst_58 [1] : vector<16x32xf32> to vector<16xf32>
    %166 = vector.shape_cast %165 : vector<16xf32> to vector<16x1xf32>
    %cst_59 = arith.constant 3.200000e+01 : f32
    %167 = vector.broadcast %cst_59 : f32 to vector<16x1xf32>
    %168 = arith.divf %166, %167 : vector<16x1xf32>
    %169 = vector.broadcast %168 : vector<16x1xf32> to vector<16x32xf32>
    %170 = arith.subf %164, %169 : vector<16x32xf32>
    %171 = arith.mulf %170, %170 : vector<16x32xf32>
    %cst_60 = arith.constant dense<0.000000e+00> : vector<16xf32>
    %172 = vector.multi_reduction <add>, %171, %cst_60 [1] : vector<16x32xf32> to vector<16xf32>
    %173 = vector.shape_cast %172 : vector<16xf32> to vector<16x1xf32>
    %cst_61 = arith.constant 3.200000e+01 : f32
    %174 = vector.broadcast %cst_61 : f32 to vector<16x1xf32>
    %175 = arith.divf %173, %174 : vector<16x1xf32>
    %176 = vector.broadcast %168 : vector<16x1xf32> to vector<16x32xf32>
    %177 = arith.subf %164, %176 : vector<16x32xf32>
    %cst_62 = arith.constant 9.99999996E-13 : f32
    %178 = vector.broadcast %cst_62 : f32 to vector<16x1xf32>
    %179 = arith.addf %175, %178 : vector<16x1xf32>
    %180 = math.rsqrt %179 : vector<16x1xf32>
    %181 = vector.broadcast %180 : vector<16x1xf32> to vector<16x32xf32>
    %182 = arith.mulf %177, %181 : vector<16x32xf32>
    %183 = vector.broadcast %10 : vector<1x32xf32> to vector<16x32xf32>
    %184 = arith.mulf %182, %183 : vector<16x32xf32>
    %185 = vector.broadcast %11 : vector<1x32xf32> to vector<16x32xf32>
    %186 = arith.addf %184, %185 : vector<16x32xf32>
    %c0_63 = arith.constant 0 : index
    %c0_64 = arith.constant 0 : index
    %187 = vector.load %arg14[%c0_63, %c0_64] : memref<16x32xf32, #tpu.memory_space<vmem>>, vector<16x32xf32>
    tpu.vector_store %arg14[%c0_63, %c0_64], %186 {strides = array<i32>} : memref<16x32xf32, #tpu.memory_space<vmem>>, vector<16x32xf32>,
    %188 = vector.shape_cast %186 : vector<16x32xf32> to vector<2x8x32xf32>
    %189 = vector.extract_strided_slice %188 {offsets = [0, 0, 0], sizes = [2, 1, 32], strides = [1, 1, 1]} : vector<2x8x32xf32> to vector<2x1x32xf32>
    %190 = vector.shape_cast %189 : vector<2x1x32xf32> to vector<2x32xf32>
    %c0_65 = arith.constant 0 : index
    %c0_66 = arith.constant 0 : index
    %191 = vector.load %arg13[%c0_65, %c0_66] : memref<2x3xf32, #tpu.memory_space<vmem>>, vector<2x3xf32>
    %c0_67 = arith.constant 0 : index
    %c0_68 = arith.constant 0 : index
    %c0_69 = arith.constant 0 : index
    %192 = vector.load %arg11[%c0_67, %c0_68, %c0_69] : memref<1x32x3xf32, #tpu.memory_space<vmem>>, vector<1x32x3xf32>
    %193 = vector.shape_cast %192 : vector<1x32x3xf32> to vector<32x3xf32>
    %cst_70 = arith.constant dense<0.000000e+00> : vector<2x3xf32>
    %194 = tpu.matmul %190, %193, %cst_70 {dimension_numbers = #tpu.dot_dimension_numbers<[1], [0], [0], [1], [0, 0, 1, 1], [], []>} : vector<2x32xf32>, vector<32x3xf32>, vector<2x3xf32> -> vector<2x3xf32>
    %195 = arith.addf %191, %194 : vector<2x3xf32>
    %c0_71 = arith.constant 0 : index
    %c0_72 = arith.constant 0 : index
    %196 = vector.load %arg13[%c0_71, %c0_72] : memref<2x3xf32, #tpu.memory_space<vmem>>, vector<2x3xf32>
    tpu.vector_store %arg13[%c0_71, %c0_72], %195 {strides = array<i32>} : memref<2x3xf32, #tpu.memory_space<vmem>>, vector<2x3xf32>,
    return
  }
  func.func @transform_0(%arg0: i32) -> (i32, i32) {
    %c0_i32 = arith.constant 0 : i32
    %c0_i32_0 = arith.constant 0 : i32
    %c0_i32_1 = arith.constant 0 : i32
    return %c0_i32, %c0_i32_0 : i32, i32
  }
  func.func @transform_1(%arg0: i32) -> (i32, i32, i32) {
    %c0_i32 = arith.constant 0 : i32
    %c0_i32_0 = arith.constant 0 : i32
    %c0_i32_1 = arith.constant 0 : i32
    %c0_i32_2 = arith.constant 0 : i32
    return %c0_i32, %c0_i32_0, %c0_i32_1 : i32, i32, i32
  }
  func.func @transform_2(%arg0: i32) -> (i32, i32) {
    %c0_i32 = arith.constant 0 : i32
    %c0_i32_0 = arith.constant 0 : i32
    %c0_i32_1 = arith.constant 0 : i32
    return %c0_i32, %c0_i32_0 : i32, i32
  }
  func.func @transform_3(%arg0: i32) -> (i32, i32, i32) {
    %c0_i32 = arith.constant 0 : i32
    %c0_i32_0 = arith.constant 0 : i32
    %c0_i32_1 = arith.constant 0 : i32
    return %arg0, %c0_i32, %c0_i32_0 : i32, i32, i32
  }
  func.func @transform_4(%arg0: i32) -> (i32, i32, i32) {
    %c0_i32 = arith.constant 0 : i32
    %c0_i32_0 = arith.constant 0 : i32
    %c0_i32_1 = arith.constant 0 : i32
    return %arg0, %c0_i32, %c0_i32_0 : i32, i32, i32
  }
  func.func @transform_5(%arg0: i32) -> (i32, i32, i32) {
    %c0_i32 = arith.constant 0 : i32
    %c0_i32_0 = arith.constant 0 : i32
    %c0_i32_1 = arith.constant 0 : i32
    return %arg0, %c0_i32, %c0_i32_0 : i32, i32, i32
  }
  func.func @transform_6(%arg0: i32) -> (i32, i32, i32) {
    %c0_i32 = arith.constant 0 : i32
    %c0_i32_0 = arith.constant 0 : i32
    %c0_i32_1 = arith.constant 0 : i32
    return %arg0, %c0_i32, %c0_i32_0 : i32, i32, i32
  }
  func.func @transform_7(%arg0: i32) -> (i32, i32, i32) {
    %c0_i32 = arith.constant 0 : i32
    %c0_i32_0 = arith.constant 0 : i32
    %c0_i32_1 = arith.constant 0 : i32
    return %arg0, %c0_i32, %c0_i32_0 : i32, i32, i32
  }
  func.func @transform_8(%arg0: i32) -> (i32, i32, i32) {
    %c0_i32 = arith.constant 0 : i32
    %c0_i32_0 = arith.constant 0 : i32
    %c0_i32_1 = arith.constant 0 : i32
    return %arg0, %c0_i32, %c0_i32_0 : i32, i32, i32
  }
  func.func @transform_9(%arg0: i32) -> (i32, i32, i32) {
    %c0_i32 = arith.constant 0 : i32
    %c0_i32_0 = arith.constant 0 : i32
    %c0_i32_1 = arith.constant 0 : i32
    return %arg0, %c0_i32, %c0_i32_0 : i32, i32, i32
  }
  func.func @transform_10(%arg0: i32) -> (i32, i32, i32) {
    %c0_i32 = arith.constant 0 : i32
    %c0_i32_0 = arith.constant 0 : i32
    %c0_i32_1 = arith.constant 0 : i32
    return %arg0, %c0_i32, %c0_i32_0 : i32, i32, i32
  }
  func.func @transform_11(%arg0: i32) -> (i32, i32) {
    %c0_i32 = arith.constant 0 : i32
    %c0_i32_0 = arith.constant 0 : i32
    %c0_i32_1 = arith.constant 0 : i32
    return %c0_i32, %c0_i32_0 : i32, i32
  }
  func.func @transform_12(%arg0: i32) -> (i32, i32) {
    %c0_i32 = arith.constant 0 : i32
    %c0_i32_0 = arith.constant 0 : i32
    %c0_i32_1 = arith.constant 0 : i32
    return %c0_i32, %c0_i32_0 : i32, i32
  }
}

</mosaic_0001>

<llo_original>
// kernel: bert_classifier_forward.1
$region0: #{bert_classifier_forward.1}
  #allocation0 [shape = 'u32[]', space=smem, size = 0x4, offset = 0x4, fixed_abs, tag = 'smem constant byte address 0x4 - core index']
  #allocation1 [shape = 'u32[144,128]{1,0:T(1,128)}', space=vmem, size = 0x12000, scoped, tag = 'internal scratch']
  #allocation2 [shape = 'f32[16,32]{1,0:T(8,128)}', space=vmem, size = 0x2000, scoped, tag = 'scratch operand']
  %s0 = inlined_call_operand.vmem [shape: f32[16,32], index: 0, kind: input, shape index: {}]
  %s1 = inlined_call_operand.vmem [shape: f32[2,1,8], index: 1, kind: input, shape index: {}]
  %s2 = inlined_call_operand.vmem [shape: f32[2,32], index: 2, kind: input, shape index: {}]
  %s3 = inlined_call_operand.vmem [shape: f32[4,32,96], index: 3, kind: input, shape index: {}]
  %s4 = inlined_call_operand.vmem [shape: f32[4,1,96], index: 4, kind: input, shape index: {}]
  %s5 = inlined_call_operand.vmem [shape: f32[4,32,32], index: 5, kind: input, shape index: {}]
  %s6 = inlined_call_operand.vmem [shape: f32[4,32,128], index: 6, kind: input, shape index: {}]
  %s7 = inlined_call_operand.vmem [shape: f32[4,1,128], index: 7, kind: input, shape index: {}]
  %s8 = inlined_call_operand.vmem [shape: f32[4,128,32], index: 8, kind: input, shape index: {}]
  %s9 = inlined_call_operand.vmem [shape: f32[4,8,32], index: 9, kind: input, shape index: {}]
  %s10 = inlined_call_operand.vmem [shape: f32[4,32,3], index: 10, kind: input, shape index: {}]
  %s11 = inlined_call_operand.vmem [shape: f32[1,3], index: 11, kind: input, shape index: {}]
  %s12 = inlined_call_operand.hbm [shape: f32[2,3], index: 12, kind: output, shape index: {}]
  %s13 = sld [smem:[#allocation0]]
  $region85: #{bert_classifier_forward.1} parent=0
    _
  %s15 = ssub.s32 1, %s13
  %s16 = scalar_select 0, %s15, %s13
  $region1: #{bert_classifier_forward.1} parent=0
    #allocation3 [shape = 'u8[1024]{0}', space=vmem, size = 0x400, scoped, tag = 'output window, operand 0, single buffered']
    #allocation4 [shape = 's32[2]{0}', space=sflag, size = 0x8, scoped, tag = 'scoped memory for bert_classifier_forward.1']
    %17 = vsyncpa [#allocation4], 0
    loop: start=0, step=1, limit=6
    $region2: #{bert_classifier_forward.1} parent=1 // loop_pre_header
      _
    $region3: #{bert_classifier_forward.1} parent=1 // loop_header
      %s19 = sphi 0, %s23
      %p20 = scmp.ge.s32.totalorder %s19, 6
      %s27 = sphi 0, %s27
      %s29 = sphi 0, %s27
      %s30 = sphi 0, %s29
      %s44 = sphi 0, %s30
      %s48 = sphi 0, %s48
      %s50 = sphi 0, %s48
      %s51 = sphi 0, %s50
      %s65 = sphi 0, %s51
      %s69 = sphi 0, %s69
      %s71 = sphi 0, %s69
      %s72 = sphi 0, %s71
      %s86 = sphi 0, %s72
      %s92 = sphi 0, %s94
      %s95 = sphi 0, %s92
      %s96 = sphi 0, %s95
      %s112 = sphi 0, %s96
      %s118 = sphi 0, %s120
      %s121 = sphi 0, %s118
      %s122 = sphi 0, %s121
      %s138 = sphi 0, %s122
      %s144 = sphi 0, %s146
      %s147 = sphi 0, %s144
      %s148 = sphi 0, %s147
      %s164 = sphi 0, %s148
      %s170 = sphi 0, %s172
      %s173 = sphi 0, %s170
      %s174 = sphi 0, %s173
      %s190 = sphi 0, %s174
      %s196 = sphi 0, %s198
      %s199 = sphi 0, %s196
      %s200 = sphi 0, %s199
      %s216 = sphi 0, %s200
      %s222 = sphi 0, %s224
      %s225 = sphi 0, %s222
      %s226 = sphi 0, %s225
      %s242 = sphi 0, %s226
      %s248 = sphi 0, %s250
      %s251 = sphi 0, %s248
      %s252 = sphi 0, %s251
      %s268 = sphi 0, %s252
      %s274 = sphi 0, %s276
      %s277 = sphi 0, %s274
      %s278 = sphi 0, %s277
      %s294 = sphi 0, %s278
      %s298 = sphi 0, %s298
      %s300 = sphi 0, %s298
      %s301 = sphi 0, %s300
      %s315 = sphi 0, %s301
      %s319 = sphi 0, %s319
      %s321 = sphi 0, %s319
      %s322 = sphi 0, %s321
      %s336 = sphi 0, %s322
    $region4: #{bert_classifier_forward.1} parent=1 // loop_header_branch
      %22 = sbr.rel (%p20) target = $region8
    $region5: #{bert_classifier_forward.1} parent=1 // loop_body
      %s24 = ssub.s32 %s19, 1
      %s25 = ssub.s32 %s19, 2
      %s26 = sadd.s32 %s19, 1
      %s28 = sadd.s32 %s27, 1
      %p31 = scmp.eq.s32.totalorder %s19, 3
      %p32 = scmp.ne.s32.totalorder %s27, %s29
      %p33 = scmp.eq.s32.totalorder %s19, 0
      %p34 = por %p32, %p33
      %p35 = scmp.ne.s32.totalorder %s27, %s29
      %p36 = scmp.eq.s32.totalorder %s24, 3
      %p37 = por %p35, %p36
      %p38 = scmp.ne.s32.totalorder %s29, %s30
      %p39 = scmp.eq.s32.totalorder %s24, 0
      %p40 = por %p38, %p39
      %p41 = scmp.ne.s32.totalorder %s29, %s30
      %p42 = scmp.eq.s32.totalorder %s25, 3
      %p43 = por %p41, %p42
      %p45 = scmp.ne.s32.totalorder %s30, %s44
      %p46 = scmp.eq.s32.totalorder %s25, 0
      %p47 = por %p45, %p46
      %s49 = sadd.s32 %s48, 1
      %p52 = scmp.eq.s32.totalorder %s19, 3
      %p53 = scmp.ne.s32.totalorder %s48, %s50
      %p54 = scmp.eq.s32.totalorder %s19, 0
      %p55 = por %p53, %p54
      %p56 = scmp.ne.s32.totalorder %s48, %s50
      %p57 = scmp.eq.s32.totalorder %s24, 3
      %p58 = por %p56, %p57
      %p59 = scmp.ne.s32.totalorder %s50, %s51
      %p60 = scmp.eq.s32.totalorder %s24, 0
      %p61 = por %p59, %p60
      %p62 = scmp.ne.s32.totalorder %s50, %s51
      %p63 = scmp.eq.s32.totalorder %s25, 3
      %p64 = por %p62, %p63
      %p66 = scmp.ne.s32.totalorder %s51, %s65
      %p67 = scmp.eq.s32.totalorder %s25, 0
      %p68 = por %p66, %p67
      %s70 = sadd.s32 %s69, 1
      %p73 = scmp.eq.s32.totalorder %s19, 3
      %p74 = scmp.ne.s32.totalorder %s69, %s71
      %p75 = scmp.eq.s32.totalorder %s19, 0
      %p76 = por %p74, %p75
      %p77 = scmp.ne.s32.totalorder %s69, %s71
      %p78 = scmp.eq.s32.totalorder %s24, 3
      %p79 = por %p77, %p78
      %p80 = scmp.ne.s32.totalorder %s71, %s72
      %p81 = scmp.eq.s32.totalorder %s24, 0
      %p82 = por %p80, %p81
      %p83 = scmp.ne.s32.totalorder %s71, %s72
      %p84 = scmp.eq.s32.totalorder %s25, 3
      %p85 = por %p83, %p84
      %p87 = scmp.ne.s32.totalorder %s72, %s86
      %p88 = scmp.eq.s32.totalorder %s25, 0
      %p89 = por %p87, %p88
      %s90 = ssub.s32 %s19, %s26
      %p91 = scmp.eq.s32.totalorder %s90, 0
      %s93 = sadd.s32 %s92, 1
      %s94 = scalar_select %p91, %s92, %s93
      %p97 = pneg %p91
      %p98 = scmp.eq.s32.totalorder %s19, 3
      %p99 = por %p97, %p98
      %p100 = scmp.ne.s32.totalorder %s92, %s95
      %p101 = scmp.eq.s32.totalorder %s19, 0
      %p102 = por %p100, %p101
      %p103 = scmp.ne.s32.totalorder %s92, %s95
      %p104 = scmp.eq.s32.totalorder %s24, 3
      %p105 = por %p103, %p104
      %p106 = scmp.ne.s32.totalorder %s95, %s96
      %p107 = scmp.eq.s32.totalorder %s24, 0
      %p108 = por %p106, %p107
      %p109 = scmp.ne.s32.totalorder %s95, %s96
      %p110 = scmp.eq.s32.totalorder %s25, 3
      %p111 = por %p109, %p110
      %p113 = scmp.ne.s32.totalorder %s96, %s112
      %p114 = scmp.eq.s32.totalorder %s25, 0
      %p115 = por %p113, %p114
      %s116 = ssub.s32 %s19, %s26
      %p117 = scmp.eq.s32.totalorder %s116, 0
      %s119 = sadd.s32 %s118, 1
      %s120 = scalar_select %p117, %s118, %s119
      %p123 = pneg %p117
      %p124 = scmp.eq.s32.totalorder %s19, 3
      %p125 = por %p123, %p124
      %p126 = scmp.ne.s32.totalorder %s118, %s121
      %p127 = scmp.eq.s32.totalorder %s19, 0
      %p128 = por %p126, %p127
      %p129 = scmp.ne.s32.totalorder %s118, %s121
      %p130 = scmp.eq.s32.totalorder %s24, 3
      %p131 = por %p129, %p130
      %p132 = scmp.ne.s32.totalorder %s121, %s122
      %p133 = scmp.eq.s32.totalorder %s24, 0
      %p134 = por %p132, %p133
      %p135 = scmp.ne.s32.totalorder %s121, %s122
      %p136 = scmp.eq.s32.totalorder %s25, 3
      %p137 = por %p135, %p136
      %p139 = scmp.ne.s32.totalorder %s122, %s138
      %p140 = scmp.eq.s32.totalorder %s25, 0
      %p141 = por %p139, %p140
      %s142 = ssub.s32 %s19, %s26
      %p143 = scmp.eq.s32.totalorder %s142, 0
      %s145 = sadd.s32 %s144, 1
      %s146 = scalar_select %p143, %s144, %s145
      %p149 = pneg %p143
      %p150 = scmp.eq.s32.totalorder %s19, 3
      %p151 = por %p149, %p150
      %p152 = scmp.ne.s32.totalorder %s144, %s147
      %p153 = scmp.eq.s32.totalorder %s19, 0
      %p154 = por %p152, %p153
      %p155 = scmp.ne.s32.totalorder %s144, %s147
      %p156 = scmp.eq.s32.totalorder %s24, 3
      %p157 = por %p155, %p156
      %p158 = scmp.ne.s32.totalorder %s147, %s148
      %p159 = scmp.eq.s32.totalorder %s24, 0
      %p160 = por %p158, %p159
      %p161 = scmp.ne.s32.totalorder %s147, %s148
      %p162 = scmp.eq.s32.totalorder %s25, 3
      %p163 = por %p161, %p162
      %p165 = scmp.ne.s32.totalorder %s148, %s164
      %p166 = scmp.eq.s32.totalorder %s25, 0
      %p167 = por %p165, %p166
      %s168 = ssub.s32 %s19, %s26
      %p169 = scmp.eq.s32.totalorder %s168, 0
      %s171 = sadd.s32 %s170, 1
      %s172 = scalar_select %p169, %s170, %s171
      %p175 = pneg %p169
      %p176 = scmp.eq.s32.totalorder %s19, 3
      %p177 = por %p175, %p176
      %p178 = scmp.ne.s32.totalorder %s170, %s173
      %p179 = scmp.eq.s32.totalorder %s19, 0
      %p180 = por %p178, %p179
      %p181 = scmp.ne.s32.totalorder %s170, %s173
      %p182 = scmp.eq.s32.totalorder %s24, 3
      %p183 = por %p181, %p182
      %p184 = scmp.ne.s32.totalorder %s173, %s174
      %p185 = scmp.eq.s32.totalorder %s24, 0
      %p186 = por %p184, %p185
      %p187 = scmp.ne.s32.totalorder %s173, %s174
      %p188 = scmp.eq.s32.totalorder %s25, 3
      %p189 = por %p187, %p188
      %p191 = scmp.ne.s32.totalorder %s174, %s190
      %p192 = scmp.eq.s32.totalorder %s25, 0
      %p193 = por %p191, %p192
      %s194 = ssub.s32 %s19, %s26
      %p195 = scmp.eq.s32.totalorder %s194, 0
      %s197 = sadd.s32 %s196, 1
      %s198 = scalar_select %p195, %s196, %s197
      %p201 = pneg %p195
      %p202 = scmp.eq.s32.totalorder %s19, 3
      %p203 = por %p201, %p202
      %p204 = scmp.ne.s32.totalorder %s196, %s199
      %p205 = scmp.eq.s32.totalorder %s19, 0
      %p206 = por %p204, %p205
      %p207 = scmp.ne.s32.totalorder %s196, %s199
      %p208 = scmp.eq.s32.totalorder %s24, 3
      %p209 = por %p207, %p208
      %p210 = scmp.ne.s32.totalorder %s199, %s200
      %p211 = scmp.eq.s32.totalorder %s24, 0
      %p212 = por %p210, %p211
      %p213 = scmp.ne.s32.totalorder %s199, %s200
      %p214 = scmp.eq.s32.totalorder %s25, 3
      %p215 = por %p213, %p214
      %p217 = scmp.ne.s32.totalorder %s200, %s216
      %p218 = scmp.eq.s32.totalorder %s25, 0
      %p219 = por %p217, %p218
      %s220 = ssub.s32 %s19, %s26
      %p221 = scmp.eq.s32.totalorder %s220, 0
      %s223 = sadd.s32 %s222, 1
      %s224 = scalar_select %p221, %s222, %s223
      %p227 = pneg %p221
      %p228 = scmp.eq.s32.totalorder %s19, 3
      %p229 = por %p227, %p228
      %p230 = scmp.ne.s32.totalorder %s222, %s225
      %p231 = scmp.eq.s32.totalorder %s19, 0
      %p232 = por %p230, %p231
      %p233 = scmp.ne.s32.totalorder %s222, %s225
      %p234 = scmp.eq.s32.totalorder %s24, 3
      %p235 = por %p233, %p234
      %p236 = scmp.ne.s32.totalorder %s225, %s226
      %p237 = scmp.eq.s32.totalorder %s24, 0
      %p238 = por %p236, %p237
      %p239 = scmp.ne.s32.totalorder %s225, %s226
      %p240 = scmp.eq.s32.totalorder %s25, 3
      %p241 = por %p239, %p240
      %p243 = scmp.ne.s32.totalorder %s226, %s242
      %p244 = scmp.eq.s32.totalorder %s25, 0
      %p245 = por %p243, %p244
      %s246 = ssub.s32 %s19, %s26
      %p247 = scmp.eq.s32.totalorder %s246, 0
      %s249 = sadd.s32 %s248, 1
      %s250 = scalar_select %p247, %s248, %s249
      %p253 = pneg %p247
      %p254 = scmp.eq.s32.totalorder %s19, 3
      %p255 = por %p253, %p254
      %p256 = scmp.ne.s32.totalorder %s248, %s251
      %p257 = scmp.eq.s32.totalorder %s19, 0
      %p258 = por %p256, %p257
      %p259 = scmp.ne.s32.totalorder %s248, %s251
      %p260 = scmp.eq.s32.totalorder %s24, 3
      %p261 = por %p259, %p260
      %p262 = scmp.ne.s32.totalorder %s251, %s252
      %p263 = scmp.eq.s32.totalorder %s24, 0
      %p264 = por %p262, %p263
      %p265 = scmp.ne.s32.totalorder %s251, %s252
      %p266 = scmp.eq.s32.totalorder %s25, 3
      %p267 = por %p265, %p266
      %p269 = scmp.ne.s32.totalorder %s252, %s268
      %p270 = scmp.eq.s32.totalorder %s25, 0
      %p271 = por %p269, %p270
      %s272 = ssub.s32 %s19, %s26
      %p273 = scmp.eq.s32.totalorder %s272, 0
      %s275 = sadd.s32 %s274, 1
      %s276 = scalar_select %p273, %s274, %s275
      %p279 = pneg %p273
      %p280 = scmp.eq.s32.totalorder %s19, 3
      %p281 = por %p279, %p280
      %p282 = scmp.ne.s32.totalorder %s274, %s277
      %p283 = scmp.eq.s32.totalorder %s19, 0
      %p284 = por %p282, %p283
      %p285 = scmp.ne.s32.totalorder %s274, %s277
      %p286 = scmp.eq.s32.totalorder %s24, 3
      %p287 = por %p285, %p286
      %p288 = scmp.ne.s32.totalorder %s277, %s278
      %p289 = scmp.eq.s32.totalorder %s24, 0
      %p290 = por %p288, %p289
      %p291 = scmp.ne.s32.totalorder %s277, %s278
      %p292 = scmp.eq.s32.totalorder %s25, 3
      %p293 = por %p291, %p292
      %p295 = scmp.ne.s32.totalorder %s278, %s294
      %p296 = scmp.eq.s32.totalorder %s25, 0
      %p297 = por %p295, %p296
      %s299 = sadd.s32 %s298, 1
      %p302 = scmp.eq.s32.totalorder %s19, 3
      %p303 = scmp.ne.s32.totalorder %s298, %s300
      %p304 = scmp.eq.s32.totalorder %s19, 0
      %p305 = por %p303, %p304
      %p306 = scmp.ne.s32.totalorder %s298, %s300
      %p307 = scmp.eq.s32.totalorder %s24, 3
      %p308 = por %p306, %p307
      %p309 = scmp.ne.s32.totalorder %s300, %s301
      %p310 = scmp.eq.s32.totalorder %s24, 0
      %p311 = por %p309, %p310
      %p312 = scmp.ne.s32.totalorder %s300, %s301
      %p313 = scmp.eq.s32.totalorder %s25, 3
      %p314 = por %p312, %p313
      %p316 = scmp.ne.s32.totalorder %s301, %s315
      %p317 = scmp.eq.s32.totalorder %s25, 0
      %p318 = por %p316, %p317
      %s320 = sadd.s32 %s319, 1
      %p323 = scmp.eq.s32.totalorder %s19, 3
      %p324 = scmp.ne.s32.totalorder %s319, %s321
      %p325 = scmp.eq.s32.totalorder %s19, 0
      %p326 = por %p324, %p325
      %p327 = scmp.ne.s32.totalorder %s319, %s321
      %p328 = scmp.eq.s32.totalorder %s24, 3
      %p329 = por %p327, %p328
      %p330 = scmp.ne.s32.totalorder %s321, %s322
      %p331 = scmp.eq.s32.totalorder %s24, 0
      %p332 = por %p330, %p331
      %p333 = scmp.ne.s32.totalorder %s321, %s322
      %p334 = scmp.eq.s32.totalorder %s25, 3
      %p335 = por %p333, %p334
      %p337 = scmp.ne.s32.totalorder %s322, %s336
      %p338 = scmp.eq.s32.totalorder %s25, 0
      %p339 = por %p337, %p338
      %p340 = scmp.le.s32.totalorder 1, %s19
      %p341 = scmp.lt.s32.totalorder %s19, 5
      %p342 = pnand %p340, %p341
      %p343 = pneg %p342
      // Predicated region
      $region9: #{bert_classifier_forward.1} parent=5 // pred_check
        _
      $region10: #{bert_classifier_forward.1} parent=5 // pred_check_branch
        %345 = sbr.rel (%p342) target = $region12
      $region11: #{bert_classifier_forward.1} parent=5 // pred_region
        %s346 = ssub.s32 %s19, 1
        // Predicated region
        $region13: #{bert_classifier_forward.1} parent=11 // pred_check
          %p347 = pneg %p40
        $region14: #{bert_classifier_forward.1} parent=11 // pred_check_branch
          %349 = sbr.rel (%p347) target = $region16
        $region15: #{bert_classifier_forward.1} parent=11 // pred_region
          _
        $region16: #{bert_classifier_forward.1} parent=11 // pred_fallthru
          _
        // Predicated region
        $region17: #{bert_classifier_forward.1} parent=11 // pred_check
          %p350 = pneg %p61
        $region18: #{bert_classifier_forward.1} parent=11 // pred_check_branch
          %352 = sbr.rel (%p350) target = $region20
        $region19: #{bert_classifier_forward.1} parent=11 // pred_region
          _
        $region20: #{bert_classifier_forward.1} parent=11 // pred_fallthru
          _
        // Predicated region
        $region21: #{bert_classifier_forward.1} parent=11 // pred_check
          %p353 = pneg %p82
        $region22: #{bert_classifier_forward.1} parent=11 // pred_check_branch
          %355 = sbr.rel (%p353) target = $region24
        $region23: #{bert_classifier_forward.1} parent=11 // pred_region
          _
        $region24: #{bert_classifier_forward.1} parent=11 // pred_fallthru
          _
        // Predicated region
        $region25: #{bert_classifier_forward.1} parent=11 // pred_check
          %p356 = pneg %p311
        $region26: #{bert_classifier_forward.1} parent=11 // pred_check_branch
          %358 = sbr.rel (%p356) target = $region28
        $region27: #{bert_classifier_forward.1} parent=11 // pred_region
          _
        $region28: #{bert_classifier_forward.1} parent=11 // pred_fallthru
          _
      $region12: #{bert_classifier_forward.1} parent=5 // pred_fallthru
        _
      %p359 = scmp.lt.s32.totalorder %s19, 4
      // Predicated region
      $region29: #{bert_classifier_forward.1} parent=5 // pred_check
        %p360 = pneg %p359
      $region30: #{bert_classifier_forward.1} parent=5 // pred_check_branch
        %362 = sbr.rel (%p360) target = $region32
      $region31: #{bert_classifier_forward.1} parent=5 // pred_region
        // Predicated region
        $region33: #{bert_classifier_forward.1} parent=31 // pred_check
          %p363 = pneg %p102
        $region34: #{bert_classifier_forward.1} parent=31 // pred_check_branch
          %365 = sbr.rel (%p363) target = $region36
        $region35: #{bert_classifier_forward.1} parent=31 // pred_region
          %p366 = scmp.lt.s32.totalorder %s19, 3
          %s367 = scalar_select %p366, %s19, 3
          %s368 = smul.addr %s367, 4
          %s369 = smul.addr %s368, 8
          %s370 = scalar_lea.vmem %s3, %s369
        $region36: #{bert_classifier_forward.1} parent=31 // pred_fallthru
          _
        // Predicated region
        $region37: #{bert_classifier_forward.1} parent=31 // pred_check
          %p371 = pneg %p128
        $region38: #{bert_classifier_forward.1} parent=31 // pred_check_branch
          %373 = sbr.rel (%p371) target = $region40
        $region39: #{bert_classifier_forward.1} parent=31 // pred_region
          %p374 = scmp.lt.s32.totalorder %s19, 3
          %s375 = scalar_select %p374, %s19, 3
          %s376 = scalar_lea.vmem %s4, %s375
        $region40: #{bert_classifier_forward.1} parent=31 // pred_fallthru
          _
        // Predicated region
        $region41: #{bert_classifier_forward.1} parent=31 // pred_check
          %p377 = pneg %p154
        $region42: #{bert_classifier_forward.1} parent=31 // pred_check_branch
          %379 = sbr.rel (%p377) target = $region44
        $region43: #{bert_classifier_forward.1} parent=31 // pred_region
          %p380 = scmp.lt.s32.totalorder %s19, 3
          %s381 = scalar_select %p380, %s19, 3
          %s382 = smul.addr %s381, 4
          %s383 = smul.addr %s382, 8
          %s384 = scalar_lea.vmem %s5, %s383
        $region44: #{bert_classifier_forward.1} parent=31 // pred_fallthru
          _
        // Predicated region
        $region45: #{bert_classifier_forward.1} parent=31 // pred_check
          %p385 = pneg %p180
        $region46: #{bert_classifier_forward.1} parent=31 // pred_check_branch
          %387 = sbr.rel (%p385) target = $region48
        $region47: #{bert_classifier_forward.1} parent=31 // pred_region
          %p388 = scmp.lt.s32.totalorder %s19, 3
          %s389 = scalar_select %p388, %s19, 3
          %s390 = smul.addr %s389, 4
          %s391 = smul.addr %s390, 8
          %s392 = scalar_lea.vmem %s6, %s391
        $region48: #{bert_classifier_forward.1} parent=31 // pred_fallthru
          _
        // Predicated region
        $region49: #{bert_classifier_forward.1} parent=31 // pred_check
          %p393 = pneg %p206
        $region50: #{bert_classifier_forward.1} parent=31 // pred_check_branch
          %395 = sbr.rel (%p393) target = $region52
        $region51: #{bert_classifier_forward.1} parent=31 // pred_region
          %p396 = scmp.lt.s32.totalorder %s19, 3
          %s397 = scalar_select %p396, %s19, 3
          %s398 = scalar_lea.vmem %s7, %s397
        $region52: #{bert_classifier_forward.1} parent=31 // pred_fallthru
          _
        // Predicated region
        $region53: #{bert_classifier_forward.1} parent=31 // pred_check
          %p399 = pneg %p232
        $region54: #{bert_classifier_forward.1} parent=31 // pred_check_branch
          %401 = sbr.rel (%p399) target = $region56
        $region55: #{bert_classifier_forward.1} parent=31 // pred_region
          %p402 = scmp.lt.s32.totalorder %s19, 3
          %s403 = scalar_select %p402, %s19, 3
          %s404 = smul.addr %s403, 16
          %s405 = smul.addr %s404, 8
          %s406 = scalar_lea.vmem %s8, %s405
        $region56: #{bert_classifier_forward.1} parent=31 // pred_fallthru
          _
        // Predicated region
        $region57: #{bert_classifier_forward.1} parent=31 // pred_check
          %p407 = pneg %p258
        $region58: #{bert_classifier_forward.1} parent=31 // pred_check_branch
          %409 = sbr.rel (%p407) target = $region60
        $region59: #{bert_classifier_forward.1} parent=31 // pred_region
          %p410 = scmp.lt.s32.totalorder %s19, 3
          %s411 = scalar_select %p410, %s19, 3
          %s412 = smul.addr %s411, 8
          %s413 = scalar_lea.vmem %s9, %s412
        $region60: #{bert_classifier_forward.1} parent=31 // pred_fallthru
          _
        // Predicated region
        $region61: #{bert_classifier_forward.1} parent=31 // pred_check
          %p414 = pneg %p284
        $region62: #{bert_classifier_forward.1} parent=31 // pred_check_branch
          %416 = sbr.rel (%p414) target = $region64
        $region63: #{bert_classifier_forward.1} parent=31 // pred_region
          %p417 = scmp.lt.s32.totalorder %s19, 3
          %s418 = scalar_select %p417, %s19, 3
          %s419 = smul.addr %s418, 4
          %s420 = smul.addr %s419, 8
          %s421 = scalar_lea.vmem %s10, %s420
        $region64: #{bert_classifier_forward.1} parent=31 // pred_fallthru
          _
      $region32: #{bert_classifier_forward.1} parent=5 // pred_fallthru
        _
      %p422 = scmp.le.s32.totalorder 1, %s19
      %p423 = scmp.lt.s32.totalorder %s19, 5
      %p424 = pnand %p422, %p423
      %p425 = pneg %p424
      // Predicated region
      $region65: #{bert_classifier_forward.1} parent=5 // pred_check
        _
      $region66: #{bert_classifier_forward.1} parent=5 // pred_check_branch
        %427 = sbr.rel (%p424) target = $region68
      $region67: #{bert_classifier_forward.1} parent=5 // pred_region
        %s428 = ssub.s32 %s19, 1
        %p429 = pneg %p40
        %p430 = pneg %p37
        %p431 = pneg %p61
        %p432 = pneg %p58
        %p433 = pneg %p82
        %p434 = pneg %p79
        %p435 = scmp.lt.s32.totalorder %s24, 3
        %s436 = scalar_select %p435, %s24, 3
        %s437 = smul.addr %s436, 4
        %s438 = smul.addr %s437, 8
        %s439 = scalar_lea.vmem %s3, %s438
        %p440 = pneg %p108
        %p441 = pneg %p105
        %p442 = scmp.lt.s32.totalorder %s24, 3
        %s443 = scalar_select %p442, %s24, 3
        %s444 = scalar_lea.vmem %s4, %s443
        %p445 = pneg %p134
        %p446 = pneg %p131
        %p447 = scmp.lt.s32.totalorder %s24, 3
        %s448 = scalar_select %p447, %s24, 3
        %s449 = smul.addr %s448, 4
        %s450 = smul.addr %s449, 8
        %s451 = scalar_lea.vmem %s5, %s450
        %p452 = pneg %p160
        %p453 = pneg %p157
        %p454 = scmp.lt.s32.totalorder %s24, 3
        %s455 = scalar_select %p454, %s24, 3
        %s456 = smul.addr %s455, 4
        %s457 = smul.addr %s456, 8
        %s458 = scalar_lea.vmem %s6, %s457
        %p459 = pneg %p186
        %p460 = pneg %p183
        %p461 = scmp.lt.s32.totalorder %s24, 3
        %s462 = scalar_select %p461, %s24, 3
        %s463 = scalar_lea.vmem %s7, %s462
        %p464 = pneg %p212
        %p465 = pneg %p209
        %p466 = scmp.lt.s32.totalorder %s24, 3
        %s467 = scalar_select %p466, %s24, 3
        %s468 = smul.addr %s467, 16
        %s469 = smul.addr %s468, 8
        %s470 = scalar_lea.vmem %s8, %s469
        %p471 = pneg %p238
        %p472 = pneg %p235
        %p473 = scmp.lt.s32.totalorder %s24, 3
        %s474 = scalar_select %p473, %s24, 3
        %s475 = smul.addr %s474, 8
        %s476 = scalar_lea.vmem %s9, %s475
        %p477 = pneg %p264
        %p478 = pneg %p261
        %p479 = scmp.lt.s32.totalorder %s24, 3
        %s480 = scalar_select %p479, %s24, 3
        %s481 = smul.addr %s480, 4
        %s482 = smul.addr %s481, 8
        %s483 = scalar_lea.vmem %s10, %s482
        %p484 = pneg %p290
        %p485 = pneg %p287
        %p486 = pneg %p311
        %p487 = pneg %p308
        %p488 = pneg %p332
        %p489 = pneg %p329
        %p490 = scmp.lt.s32.totalorder %s24, 3
        %s491 = scalar_select %p490, %s24, 3
        %s492 = smul.addr %s491, 4
        %s493 = smul.addr %s492, 8
        %s494 = scalar_lea.vmem %s3, %s493
        %p495 = scmp.lt.s32.totalorder %s24, 3
        %s496 = scalar_select %p495, %s24, 3
        %s497 = scalar_lea.vmem %s4, %s496
        %p498 = scmp.lt.s32.totalorder %s24, 3
        %s499 = scalar_select %p498, %s24, 3
        %s500 = smul.addr %s499, 4
        %s501 = smul.addr %s500, 8
        %s502 = scalar_lea.vmem %s5, %s501
        %p503 = scmp.lt.s32.totalorder %s24, 3
        %s504 = scalar_select %p503, %s24, 3
        %s505 = smul.addr %s504, 4
        %s506 = smul.addr %s505, 8
        %s507 = scalar_lea.vmem %s6, %s506
        %p508 = scmp.lt.s32.totalorder %s24, 3
        %s509 = scalar_select %p508, %s24, 3
        %s510 = scalar_lea.vmem %s7, %s509
        %p511 = scmp.lt.s32.totalorder %s24, 3
        %s512 = scalar_select %p511, %s24, 3
        %s513 = smul.addr %s512, 16
        %s514 = smul.addr %s513, 8
        %s515 = scalar_lea.vmem %s8, %s514
        %p516 = scmp.lt.s32.totalorder %s24, 3
        %s517 = scalar_select %p516, %s24, 3
        %s518 = smul.addr %s517, 8
        %s519 = scalar_lea.vmem %s9, %s518
        %p520 = scmp.lt.s32.totalorder %s24, 3
        %s521 = scalar_select %p520, %s24, 3
        %s522 = smul.addr %s521, 4
        %s523 = smul.addr %s522, 8
        %s524 = scalar_lea.vmem %s10, %s523
        %p525 = scmp.eq.s32.totalorder %s24, 0
        // Predicated region
        $region69: #{bert_classifier_forward.1} parent=67 // pred_check
          %p526 = pneg %p525
        $region70: #{bert_classifier_forward.1} parent=67 // pred_check_branch
          %528 = sbr.rel (%p526) target = $region72
        $region71: #{bert_classifier_forward.1} parent=67 // pred_region
          %v529 = vld [vmem:[%s0] sm:$0xff]
          %v530 = vld [vmem:[%s0 + $0x8] sm:$0xff]
          %v531 = vld [vmem:[%s2] sm:$0x1]
          %v532 = vld [vmem:[%s2 + $0x1] sm:$0x1]
          %vm533 = vcmask 261120
          %v534 = vsel %vm533, %v529, 0.0
          %535 = vadd.xlane.f32.xlu0 %v534
          %v536 = vpop.xlane.xlu0 %535
          %v537 = vsel %vm533, %v530, 0.0
          %538 = vadd.xlane.f32.xlu0 %v537
          %v539 = vpop.xlane.xlu0 %538
          %v540 = vrcp.pop 32.0
          %v541 = vmul.f32 %v536, %v540
          %v542 = vmul.f32 %v539, %v540
          %v543 = vsub.f32 %v529, %v541
          %v544 = vsub.f32 %v530, %v542
          %v545 = vmul.f32 %v543, %v543
          %v546 = vmul.f32 %v544, %v544
          %v547 = vsel %vm533, %v545, 0.0
          %548 = vadd.xlane.f32.xlu0 %v547
          %v549 = vpop.xlane.xlu0 %548
          %v550 = vsel %vm533, %v546, 0.0
          %551 = vadd.xlane.f32.xlu0 %v550
          %v552 = vpop.xlane.xlu0 %551
          %v553 = vmul.f32 %v549, %v540
          %v554 = vmul.f32 %v552, %v540
          %v555 = vadd.f32 %v553, 1e-12
          %v556 = vadd.f32 %v554, 1e-12
          %v557 = vrsqrt.pop %v555
          %v558 = vrsqrt.pop %v556
          %v559 = vmul.f32 %v543, %v557
          %v560 = vmul.f32 %v544, %v558
          %v561 = vlaneseq
          %v562 = vshrl.u32 %v561, 7
          %v563 = vsub.s32 0, %v562
          %v564 = vrot.slane %v531, %v563
          %v565 = vmul.f32 %v559, %v564
          %v566 = vmul.f32 %v560, %v564
          %v567 = vlaneseq
          %v568 = vshrl.u32 %v567, 7
          %v569 = vsub.s32 0, %v568
          %v570 = vrot.slane %v532, %v569
          %v571 = vadd.f32 %v565, %v570
          %v572 = vadd.f32 %v566, %v570
          %573 = vst.msk [vmem:[#allocation2] sm:$0xff] %vm533, %v571
          %574 = vst.msk [vmem:[#allocation2 + $0x8] sm:$0xff] %vm533, %v572
          %v575 = vld [vmem:[%s11] sm:$0x1]
          %v577 = vlaneseq
          %v578 = vshrl.u32 %v577, 7
          %v579 = vsub.s32 0, %v578
          %v580 = vrot.slane %v575, %v579
          %vm582 = vcmask 17408
          %583 = vst.msk [vmem:[#allocation3] sm:$0x3] %vm582, %v580
        $region72: #{bert_classifier_forward.1} parent=67 // pred_fallthru
          _
        %v584 = vld [vmem:[#allocation2] sm:$0xff]
        %v585 = vld [vmem:[#allocation2 + $0x8] sm:$0xff]
        %v586 = vld [vmem:[%s519] sm:$0xff]
        %v587 = vld [vmem:[%s1] sm:$0x1]
        %v588 = vld [vmem:[%s1 + $0x1] sm:$0x1]
        %v591 = vlaneseq
        %v592 = vshrl.u32 %v591, 7
        %v593 = vsub.s32 0, %v592
        %v594 = vrot.slane %v587, %v593
        %v595 = vlaneseq
        %v596 = vshrl.u32 %v595, 7
        %v597 = vsub.s32 0, %v596
        %v598 = vrot.slane %v588, %v597
        %v601 = vld [vmem:[%s494] sm:$0xff]
        %v602 = vld [vmem:[%s494 + $0x8] sm:$0xff]
        %v603 = vld [vmem:[%s494 + $0x10] sm:$0xff]
        %v604 = vld [vmem:[%s494 + $0x18] sm:$0xff]
        %v605 = vld [vmem:[%s497] sm:$0x1]
        %v607 = vlaneseq
        %v608 = vshrl.u32 %v607, 7
        %v609 = vsub.s32 0, %v608
        %v610 = vrot.slane %v605, %v609
        %vm612 = vcmask 261120
        %v614 = vsel %vm612, %v584, 0
        %v617 = vsel %vm612, %v585, 0
        %619 = vmatprep.subr.mxu0 0.0
        %620 = vmatpush1.msra.mxu0 %v601
        %621 = vmatprep.subr.mxu0 0.0
        %622 = vmatpush1.msra.mxu0 %v602
        %623 = vmatprep.subr.mxu0 0.0
        %624 = vmatpush1.msra.mxu0 %v603
        %625 = vmatprep.subr.mxu0 0.0
        %626 = vmatpush1.msra.mxu0 %v604
        %627 = vmatprep.subr.mxu0 0.0
        %628 = vmatpush1.msra.mxu0 0.0
        %629 = vmatprep.subr.mxu0 0.0
        %630 = vmatpush1.msra.mxu0 0.0
        %631 = vmatprep.subr.mxu0 0.0
        %632 = vmatpush1.msra.mxu0 0.0
        %633 = vmatprep.subr.mxu0 0.0
        %634 = vmatpush1.msra.mxu0 0.0
        %635 = vmatprep.subr.mxu0 0.0
        %636 = vmatpush1.msra.mxu0 0.0
        %637 = vmatprep.subr.mxu0 0.0
        %638 = vmatpush1.msra.mxu0 0.0
        %639 = vmatprep.subr.mxu0 0.0
        %640 = vmatpush1.msra.mxu0 0.0
        %641 = vmatprep.subr.mxu0 0.0
        %642 = vmatpush1.msra.mxu0 0.0
        %643 = vmatprep.subr.mxu0 0.0
        %644 = vmatpush1.msra.mxu0 0.0
        %645 = vmatprep.subr.mxu0 0.0
        %646 = vmatpush1.msra.mxu0 0.0
        %647 = vmatprep.subr.mxu0 0.0
        %648 = vmatpush1.msra.mxu0 0.0
        %649 = vmatprep.subr.mxu0 0.0
        %650 = vmatpush1.msra.mxu0 0.0
        %651 = vmatprep.subr.mxu0 0.0
        %652 = vmatpush1.msra.mxu0 0.0
        %653 = vmatprep.subr.mxu0 0.0
        %654 = vmatpush1.msra.mxu0 0.0
        %655 = vmatprep.subr.mxu0 0.0
        %656 = vmatpush1.msra.mxu0 0.0
        %657 = vmatprep.subr.mxu0 0.0
        %658 = vmatpush1.msra.mxu0 0.0
        %659 = vmatprep.subr.mxu0 0.0
        %660 = vmatpush1.msra.mxu0 0.0
        %661 = vmatprep.subr.mxu0 0.0
        %662 = vmatpush1.msra.mxu0 0.0
        %663 = vmatprep.subr.mxu0 0.0
        %664 = vmatpush1.msra.mxu0 0.0
        %665 = vmatprep.subr.mxu0 0.0
        %666 = vmatpush1.msra.mxu0 0.0
        %667 = vmatprep.subr.mxu0 0.0
        %668 = vmatpush1.msra.mxu0 0.0
        %669 = vmatprep.subr.mxu0 0.0
        %670 = vmatpush1.msra.mxu0 0.0
        %671 = vmatprep.subr.mxu0 0.0
        %672 = vmatpush1.msra.mxu0 0.0
        %673 = vmatprep.subr.mxu0 0.0
        %674 = vmatpush1.msra.mxu0 0.0
        %675 = vmatprep.subr.mxu0 0.0
        %676 = vmatpush1.msra.mxu0 0.0
        %677 = vmatprep.subr.mxu0 0.0
        %678 = vmatpush1.msra.mxu0 0.0
        %679 = vmatprep.subr.mxu0 0.0
        %680 = vmatpush1.msra.mxu0 0.0
        %681 = vmatprep.subr.mxu0 0.0
        %682 = vmatpush1.msra.mxu0 0.0
        %683 = vmatprep.mubr.f32.mxu0 0.0
        %684 = vmatmul.mubr.f32.gmra.mrb[0].mxu0 %v614
        %v685 = vpop.f32.mrb[0].mxu0
        %v686 = vadd.f32 %v610, %v685
        %v687 = vpop.f32.mrb[0].mxu0
        %688 = vmatprep.mubr.f32.mxu0 0.0
        %689 = vmatmul.mubr.f32.gmra.mrb[0].mxu0 %v617
        %v690 = vpop.f32.mrb[0].mxu0
        %v691 = vadd.f32 %v610, %v690
        %v692 = vpop.f32.mrb[0].mxu0
        %693 = vdwg.mxu0
        %695 = vrot.lane.b32.xlu0 %v686, 96
        %v696 = vpop.permute.xlu0 %695
        %vm697 = vcmask 64512
        %v698 = vsel %vm697, %v686, 0
        %v700 = vsel %vm697, %v696, 0
        %702 = vmatprep.subr.mxu0 0.0
        %703 = vmatpush1.xpose.msra.mxu0 %v700
        %704 = vmatprep.subr.mxu0 0.0
        %705 = vmatpush1.xpose.msra.mxu0 0.0
        %706 = vmatprep.subr.mxu0 0.0
        %707 = vmatpush1.xpose.msra.mxu0 0.0
        %708 = vmatprep.subr.mxu0 0.0
        %709 = vmatpush1.xpose.msra.mxu0 0.0
        %710 = vmatprep.subr.mxu0 0.0
        %711 = vmatpush1.xpose.msra.mxu0 0.0
        %712 = vmatprep.subr.mxu0 0.0
        %713 = vmatpush1.xpose.msra.mxu0 0.0
        %714 = vmatprep.subr.mxu0 0.0
        %715 = vmatpush1.xpose.msra.mxu0 0.0
        %716 = vmatprep.subr.mxu0 0.0
        %717 = vmatpush1.xpose.msra.mxu0 0.0
        %718 = vmatprep.subr.mxu0 0.0
        %719 = vmatpush1.xpose.msra.mxu0 0.0
        %720 = vmatprep.subr.mxu0 0.0
        %721 = vmatpush1.xpose.msra.mxu0 0.0
        %722 = vmatprep.subr.mxu0 0.0
        %723 = vmatpush1.xpose.msra.mxu0 0.0
        %724 = vmatprep.subr.mxu0 0.0
        %725 = vmatpush1.xpose.msra.mxu0 0.0
        %726 = vmatprep.subr.mxu0 0.0
        %727 = vmatpush1.xpose.msra.mxu0 0.0
        %728 = vmatprep.subr.mxu0 0.0
        %729 = vmatpush1.xpose.msra.mxu0 0.0
        %730 = vmatprep.subr.mxu0 0.0
        %731 = vmatpush1.xpose.msra.mxu0 0.0
        %732 = vmatprep.subr.mxu0 0.0
        %733 = vmatpush1.xpose.msra.mxu0 0.0
        %734 = vmatprep.subr.mxu0 0.0
        %735 = vmatpush1.xpose.msra.mxu0 0.0
        %736 = vmatprep.subr.mxu0 0.0
        %737 = vmatpush1.xpose.msra.mxu0 0.0
        %738 = vmatprep.subr.mxu0 0.0
        %739 = vmatpush1.xpose.msra.mxu0 0.0
        %740 = vmatprep.subr.mxu0 0.0
        %741 = vmatpush1.xpose.msra.mxu0 0.0
        %742 = vmatprep.subr.mxu0 0.0
        %743 = vmatpush1.xpose.msra.mxu0 0.0
        %744 = vmatprep.subr.mxu0 0.0
        %745 = vmatpush1.xpose.msra.mxu0 0.0
        %746 = vmatprep.subr.mxu0 0.0
        %747 = vmatpush1.xpose.msra.mxu0 0.0
        %748 = vmatprep.subr.mxu0 0.0
        %749 = vmatpush1.xpose.msra.mxu0 0.0
        %750 = vmatprep.subr.mxu0 0.0
        %751 = vmatpush1.xpose.msra.mxu0 0.0
        %752 = vmatprep.subr.mxu0 0.0
        %753 = vmatpush1.xpose.msra.mxu0 0.0
        %754 = vmatprep.subr.mxu0 0.0
        %755 = vmatpush1.xpose.msra.mxu0 0.0
        %756 = vmatprep.subr.mxu0 0.0
        %757 = vmatpush1.xpose.msra.mxu0 0.0
        %758 = vmatprep.subr.mxu0 0.0
        %759 = vmatpush1.xpose.msra.mxu0 0.0
        %760 = vmatprep.subr.mxu0 0.0
        %761 = vmatpush1.xpose.msra.mxu0 0.0
        %762 = vmatprep.subr.mxu0 0.0
        %763 = vmatpush1.xpose.msra.mxu0 0.0
        %764 = vmatprep.subr.mxu0 0.0
        %765 = vmatpush1.xpose.msra.mxu0 0.0
        %766 = vmatprep.mubr.f32.mxu0 0.0
        %767 = vmatmul.mubr.f32.gmra.mrb[0].mxu0 %v698
        %v768 = vpop.f32.mrb[0].mxu0
        %v769 = vadd.f32 0.0, %v768
        %v770 = vpop.f32.mrb[0].mxu0
        %771 = vdwg.mxu0
        %773 = vrot.lane.b32.xlu0 %v691, 96
        %v774 = vpop.permute.xlu0 %773
        %v775 = vsel %vm697, %v691, 0
        %v777 = vsel %vm697, %v774, 0
        %779 = vmatprep.subr.mxu0 0.0
        %780 = vmatpush1.xpose.msra.mxu0 %v777
        %781 = vmatprep.subr.mxu0 0.0
        %782 = vmatpush1.xpose.msra.mxu0 0.0
        %783 = vmatprep.subr.mxu0 0.0
        %784 = vmatpush1.xpose.msra.mxu0 0.0
        %785 = vmatprep.subr.mxu0 0.0
        %786 = vmatpush1.xpose.msra.mxu0 0.0
        %787 = vmatprep.subr.mxu0 0.0
        %788 = vmatpush1.xpose.msra.mxu0 0.0
        %789 = vmatprep.subr.mxu0 0.0
        %790 = vmatpush1.xpose.msra.mxu0 0.0
        %791 = vmatprep.subr.mxu0 0.0
        %792 = vmatpush1.xpose.msra.mxu0 0.0
        %793 = vmatprep.subr.mxu0 0.0
        %794 = vmatpush1.xpose.msra.mxu0 0.0
        %795 = vmatprep.subr.mxu0 0.0
        %796 = vmatpush1.xpose.msra.mxu0 0.0
        %797 = vmatprep.subr.mxu0 0.0
        %798 = vmatpush1.xpose.msra.mxu0 0.0
        %799 = vmatprep.subr.mxu0 0.0
        %800 = vmatpush1.xpose.msra.mxu0 0.0
        %801 = vmatprep.subr.mxu0 0.0
        %802 = vmatpush1.xpose.msra.mxu0 0.0
        %803 = vmatprep.subr.mxu0 0.0
        %804 = vmatpush1.xpose.msra.mxu0 0.0
        %805 = vmatprep.subr.mxu0 0.0
        %806 = vmatpush1.xpose.msra.mxu0 0.0
        %807 = vmatprep.subr.mxu0 0.0
        %808 = vmatpush1.xpose.msra.mxu0 0.0
        %809 = vmatprep.subr.mxu0 0.0
        %810 = vmatpush1.xpose.msra.mxu0 0.0
        %811 = vmatprep.subr.mxu0 0.0
        %812 = vmatpush1.xpose.msra.mxu0 0.0
        %813 = vmatprep.subr.mxu0 0.0
        %814 = vmatpush1.xpose.msra.mxu0 0.0
        %815 = vmatprep.subr.mxu0 0.0
        %816 = vmatpush1.xpose.msra.mxu0 0.0
        %817 = vmatprep.subr.mxu0 0.0
        %818 = vmatpush1.xpose.msra.mxu0 0.0
        %819 = vmatprep.subr.mxu0 0.0
        %820 = vmatpush1.xpose.msra.mxu0 0.0
        %821 = vmatprep.subr.mxu0 0.0
        %822 = vmatpush1.xpose.msra.mxu0 0.0
        %823 = vmatprep.subr.mxu0 0.0
        %824 = vmatpush1.xpose.msra.mxu0 0.0
        %825 = vmatprep.subr.mxu0 0.0
        %826 = vmatpush1.xpose.msra.mxu0 0.0
        %827 = vmatprep.subr.mxu0 0.0
        %828 = vmatpush1.xpose.msra.mxu0 0.0
        %829 = vmatprep.subr.mxu0 0.0
        %830 = vmatpush1.xpose.msra.mxu0 0.0
        %831 = vmatprep.subr.mxu0 0.0
        %832 = vmatpush1.xpose.msra.mxu0 0.0
        %833 = vmatprep.subr.mxu0 0.0
        %834 = vmatpush1.xpose.msra.mxu0 0.0
        %835 = vmatprep.subr.mxu0 0.0
        %836 = vmatpush1.xpose.msra.mxu0 0.0
        %837 = vmatprep.subr.mxu0 0.0
        %838 = vmatpush1.xpose.msra.mxu0 0.0
        %839 = vmatprep.subr.mxu0 0.0
        %840 = vmatpush1.xpose.msra.mxu0 0.0
        %841 = vmatprep.subr.mxu0 0.0
        %842 = vmatpush1.xpose.msra.mxu0 0.0
        %843 = vmatprep.mubr.f32.mxu0 0.0
        %844 = vmatmul.mubr.f32.gmra.mrb[0].mxu0 %v775
        %v845 = vpop.f32.mrb[0].mxu0
        %v846 = vadd.f32 0.0, %v845
        %v847 = vpop.f32.mrb[0].mxu0
        %848 = vdwg.mxu0
        %v849 = vmul.f32 %v769, 0.35355338
        %v850 = vmul.f32 %v846, 0.35355338
        %v851 = vadd.f32 %v849, %v594
        %v852 = vadd.f32 %v850, %v598
        %v853 = vsel %vm697, %v851, -inf
        %854 = vmax.xlane.f32.xlu0 %v853
        %v855 = vpop.xlane.xlu0 %854
        %v856 = vsel %vm697, %v852, -inf
        %857 = vmax.xlane.f32.xlu0 %v856
        %v858 = vpop.xlane.xlu0 %857
        %v859 = vsub.f32 %v851, %v855
        %v860 = vsub.f32 %v852, %v858
        %v861 = vmul.f32 %v859, 1.442695
        %v862 = vpow.pop %v861
        %v863 = vmul.f32 %v860, 1.442695
        %v864 = vpow.pop %v863
        %v865 = vsel %vm697, %v862, 0.0
        %866 = vadd.xlane.f32.xlu0 %v865
        %v867 = vpop.xlane.xlu0 %866
        %v868 = vsel %vm697, %v864, 0.0
        %869 = vadd.xlane.f32.xlu0 %v868
        %v870 = vpop.xlane.xlu0 %869
        %v871 = vrcp.pop %v867
        %v872 = vrcp.pop %v870
        %v873 = vmul.f32 %v862, %v871
        %v874 = vmul.f32 %v864, %v872
        %875 = vrot.lane.b32.xlu0 %v686, 64
        %v876 = vpop.permute.xlu0 %875
        %v879 = vsel %vm697, %v873, 0
        %881 = vmatprep.subr.mxu0 0.0
        %882 = vmatpush1.msra.mxu0 %v876
        %883 = vmatprep.subr.mxu0 0.0
        %884 = vmatpush1.msra.mxu0 0.0
        %885 = vmatprep.subr.mxu0 0.0
        %886 = vmatpush1.msra.mxu0 0.0
        %887 = vmatprep.subr.mxu0 0.0
        %888 = vmatpush1.msra.mxu0 0.0
        %889 = vmatprep.subr.mxu0 0.0
        %890 = vmatpush1.msra.mxu0 0.0
        %891 = vmatprep.subr.mxu0 0.0
        %892 = vmatpush1.msra.mxu0 0.0
        %893 = vmatprep.subr.mxu0 0.0
        %894 = vmatpush1.msra.mxu0 0.0
        %895 = vmatprep.subr.mxu0 0.0
        %896 = vmatpush1.msra.mxu0 0.0
        %897 = vmatprep.subr.mxu0 0.0
        %898 = vmatpush1.msra.mxu0 0.0
        %899 = vmatprep.subr.mxu0 0.0
        %900 = vmatpush1.msra.mxu0 0.0
        %901 = vmatprep.subr.mxu0 0.0
        %902 = vmatpush1.msra.mxu0 0.0
        %903 = vmatprep.subr.mxu0 0.0
        %904 = vmatpush1.msra.mxu0 0.0
        %905 = vmatprep.subr.mxu0 0.0
        %906 = vmatpush1.msra.mxu0 0.0
        %907 = vmatprep.subr.mxu0 0.0
        %908 = vmatpush1.msra.mxu0 0.0
        %909 = vmatprep.subr.mxu0 0.0
        %910 = vmatpush1.msra.mxu0 0.0
        %911 = vmatprep.subr.mxu0 0.0
        %912 = vmatpush1.msra.mxu0 0.0
        %913 = vmatprep.subr.mxu0 0.0
        %914 = vmatpush1.msra.mxu0 0.0
        %915 = vmatprep.subr.mxu0 0.0
        %916 = vmatpush1.msra.mxu0 0.0
        %917 = vmatprep.subr.mxu0 0.0
        %918 = vmatpush1.msra.mxu0 0.0
        %919 = vmatprep.subr.mxu0 0.0
        %920 = vmatpush1.msra.mxu0 0.0
        %921 = vmatprep.subr.mxu0 0.0
        %922 = vmatpush1.msra.mxu0 0.0
        %923 = vmatprep.subr.mxu0 0.0
        %924 = vmatpush1.msra.mxu0 0.0
        %925 = vmatprep.subr.mxu0 0.0
        %926 = vmatpush1.msra.mxu0 0.0
        %927 = vmatprep.subr.mxu0 0.0
        %928 = vmatpush1.msra.mxu0 0.0
        %929 = vmatprep.subr.mxu0 0.0
        %930 = vmatpush1.msra.mxu0 0.0
        %931 = vmatprep.subr.mxu0 0.0
        %932 = vmatpush1.msra.mxu0 0.0
        %933 = vmatprep.subr.mxu0 0.0
        %934 = vmatpush1.msra.mxu0 0.0
        %935 = vmatprep.subr.mxu0 0.0
        %936 = vmatpush1.msra.mxu0 0.0
        %937 = vmatprep.subr.mxu0 0.0
        %938 = vmatpush1.msra.mxu0 0.0
        %939 = vmatprep.subr.mxu0 0.0
        %940 = vmatpush1.msra.mxu0 0.0
        %941 = vmatprep.subr.mxu0 0.0
        %942 = vmatpush1.msra.mxu0 0.0
        %943 = vmatprep.subr.mxu0 0.0
        %944 = vmatpush1.msra.mxu0 0.0
        %945 = vmatprep.mubr.f32.mxu0 0.0
        %946 = vmatmul.mubr.f32.gmra.mrb[0].mxu0 %v879
        %v947 = vpop.f32.mrb[0].mxu0
        %v948 = vadd.f32 0.0, %v947
        %v949 = vpop.f32.mrb[0].mxu0
        %950 = vdwg.mxu0
        %951 = vrot.lane.b32.xlu0 %v691, 64
        %v952 = vpop.permute.xlu0 %951
        %v955 = vsel %vm697, %v874, 0
        %957 = vmatprep.subr.mxu0 0.0
        %958 = vmatpush1.msra.mxu0 %v952
        %959 = vmatprep.subr.mxu0 0.0
        %960 = vmatpush1.msra.mxu0 0.0
        %961 = vmatprep.subr.mxu0 0.0
        %962 = vmatpush1.msra.mxu0 0.0
        %963 = vmatprep.subr.mxu0 0.0
        %964 = vmatpush1.msra.mxu0 0.0
        %965 = vmatprep.subr.mxu0 0.0
        %966 = vmatpush1.msra.mxu0 0.0
        %967 = vmatprep.subr.mxu0 0.0
        %968 = vmatpush1.msra.mxu0 0.0
        %969 = vmatprep.subr.mxu0 0.0
        %970 = vmatpush1.msra.mxu0 0.0
        %971 = vmatprep.subr.mxu0 0.0
        %972 = vmatpush1.msra.mxu0 0.0
        %973 = vmatprep.subr.mxu0 0.0
        %974 = vmatpush1.msra.mxu0 0.0
        %975 = vmatprep.subr.mxu0 0.0
        %976 = vmatpush1.msra.mxu0 0.0
        %977 = vmatprep.subr.mxu0 0.0
        %978 = vmatpush1.msra.mxu0 0.0
        %979 = vmatprep.subr.mxu0 0.0
        %980 = vmatpush1.msra.mxu0 0.0
        %981 = vmatprep.subr.mxu0 0.0
        %982 = vmatpush1.msra.mxu0 0.0
        %983 = vmatprep.subr.mxu0 0.0
        %984 = vmatpush1.msra.mxu0 0.0
        %985 = vmatprep.subr.mxu0 0.0
        %986 = vmatpush1.msra.mxu0 0.0
        %987 = vmatprep.subr.mxu0 0.0
        %988 = vmatpush1.msra.mxu0 0.0
        %989 = vmatprep.subr.mxu0 0.0
        %990 = vmatpush1.msra.mxu0 0.0
        %991 = vmatprep.subr.mxu0 0.0
        %992 = vmatpush1.msra.mxu0 0.0
        %993 = vmatprep.subr.mxu0 0.0
        %994 = vmatpush1.msra.mxu0 0.0
        %995 = vmatprep.subr.mxu0 0.0
        %996 = vmatpush1.msra.mxu0 0.0
        %997 = vmatprep.subr.mxu0 0.0
        %998 = vmatpush1.msra.mxu0 0.0
        %999 = vmatprep.subr.mxu0 0.0
        %1000 = vmatpush1.msra.mxu0 0.0
        %1001 = vmatprep.subr.mxu0 0.0
        %1002 = vmatpush1.msra.mxu0 0.0
        %1003 = vmatprep.subr.mxu0 0.0
        %1004 = vmatpush1.msra.mxu0 0.0
        %1005 = vmatprep.subr.mxu0 0.0
        %1006 = vmatpush1.msra.mxu0 0.0
        %1007 = vmatprep.subr.mxu0 0.0
        %1008 = vmatpush1.msra.mxu0 0.0
        %1009 = vmatprep.subr.mxu0 0.0
        %1010 = vmatpush1.msra.mxu0 0.0
        %1011 = vmatprep.subr.mxu0 0.0
        %1012 = vmatpush1.msra.mxu0 0.0
        %1013 = vmatprep.subr.mxu0 0.0
        %1014 = vmatpush1.msra.mxu0 0.0
        %1015 = vmatprep.subr.mxu0 0.0
        %1016 = vmatpush1.msra.mxu0 0.0
        %1017 = vmatprep.subr.mxu0 0.0
        %1018 = vmatpush1.msra.mxu0 0.0
        %1019 = vmatprep.subr.mxu0 0.0
        %1020 = vmatpush1.msra.mxu0 0.0
        %1021 = vmatprep.mubr.f32.mxu0 0.0
        %1022 = vmatmul.mubr.f32.gmra.mrb[0].mxu0 %v955
        %v1023 = vpop.f32.mrb[0].mxu0
        %v1024 = vadd.f32 0.0, %v1023
        %v1025 = vpop.f32.mrb[0].mxu0
        %1026 = vdwg.mxu0
        %1027 = vrot.lane.b32.xlu0 %v686, 120
        %v1028 = vpop.permute.xlu0 %1027
        %1029 = vrot.lane.b32.xlu0 %v686, 88
        %v1030 = vpop.permute.xlu0 %1029
        %v1031 = vsel %vm697, %v1028, 0
        %v1033 = vsel %vm697, %v1030, 0
        %1035 = vmatprep.subr.mxu0 0.0
        %1036 = vmatpush1.xpose.msra.mxu0 %v1033
        %1037 = vmatprep.subr.mxu0 0.0
        %1038 = vmatpush1.xpose.msra.mxu0 0.0
        %1039 = vmatprep.subr.mxu0 0.0
        %1040 = vmatpush1.xpose.msra.mxu0 0.0
        %1041 = vmatprep.subr.mxu0 0.0
        %1042 = vmatpush1.xpose.msra.mxu0 0.0
        %1043 = vmatprep.subr.mxu0 0.0
        %1044 = vmatpush1.xpose.msra.mxu0 0.0
        %1045 = vmatprep.subr.mxu0 0.0
        %1046 = vmatpush1.xpose.msra.mxu0 0.0
        %1047 = vmatprep.subr.mxu0 0.0
        %1048 = vmatpush1.xpose.msra.mxu0 0.0
        %1049 = vmatprep.subr.mxu0 0.0
        %1050 = vmatpush1.xpose.msra.mxu0 0.0
        %1051 = vmatprep.subr.mxu0 0.0
        %1052 = vmatpush1.xpose.msra.mxu0 0.0
        %1053 = vmatprep.subr.mxu0 0.0
        %1054 = vmatpush1.xpose.msra.mxu0 0.0
        %1055 = vmatprep.subr.mxu0 0.0
        %1056 = vmatpush1.xpose.msra.mxu0 0.0
        %1057 = vmatprep.subr.mxu0 0.0
        %1058 = vmatpush1.xpose.msra.mxu0 0.0
        %1059 = vmatprep.subr.mxu0 0.0
        %1060 = vmatpush1.xpose.msra.mxu0 0.0
        %1061 = vmatprep.subr.mxu0 0.0
        %1062 = vmatpush1.xpose.msra.mxu0 0.0
        %1063 = vmatprep.subr.mxu0 0.0
        %1064 = vmatpush1.xpose.msra.mxu0 0.0
        %1065 = vmatprep.subr.mxu0 0.0
        %1066 = vmatpush1.xpose.msra.mxu0 0.0
        %1067 = vmatprep.subr.mxu0 0.0
        %1068 = vmatpush1.xpose.msra.mxu0 0.0
        %1069 = vmatprep.subr.mxu0 0.0
        %1070 = vmatpush1.xpose.msra.mxu0 0.0
        %1071 = vmatprep.subr.mxu0 0.0
        %1072 = vmatpush1.xpose.msra.mxu0 0.0
        %1073 = vmatprep.subr.mxu0 0.0
        %1074 = vmatpush1.xpose.msra.mxu0 0.0
        %1075 = vmatprep.subr.mxu0 0.0
        %1076 = vmatpush1.xpose.msra.mxu0 0.0
        %1077 = vmatprep.subr.mxu0 0.0
        %1078 = vmatpush1.xpose.msra.mxu0 0.0
        %1079 = vmatprep.subr.mxu0 0.0
        %1080 = vmatpush1.xpose.msra.mxu0 0.0
        %1081 = vmatprep.subr.mxu0 0.0
        %1082 = vmatpush1.xpose.msra.mxu0 0.0
        %1083 = vmatprep.subr.mxu0 0.0
        %1084 = vmatpush1.xpose.msra.mxu0 0.0
        %1085 = vmatprep.subr.mxu0 0.0
        %1086 = vmatpush1.xpose.msra.mxu0 0.0
        %1087 = vmatprep.subr.mxu0 0.0
        %1088 = vmatpush1.xpose.msra.mxu0 0.0
        %1089 = vmatprep.subr.mxu0 0.0
        %1090 = vmatpush1.xpose.msra.mxu0 0.0
        %1091 = vmatprep.subr.mxu0 0.0
        %1092 = vmatpush1.xpose.msra.mxu0 0.0
        %1093 = vmatprep.subr.mxu0 0.0
        %1094 = vmatpush1.xpose.msra.mxu0 0.0
        %1095 = vmatprep.subr.mxu0 0.0
        %1096 = vmatpush1.xpose.msra.mxu0 0.0
        %1097 = vmatprep.subr.mxu0 0.0
        %1098 = vmatpush1.xpose.msra.mxu0 0.0
        %1099 = vmatprep.mubr.f32.mxu0 0.0
        %1100 = vmatmul.mubr.f32.gmra.mrb[0].mxu0 %v1031
        %v1101 = vpop.f32.mrb[0].mxu0
        %v1102 = vadd.f32 0.0, %v1101
        %v1103 = vpop.f32.mrb[0].mxu0
        %1104 = vdwg.mxu0
        %1105 = vrot.lane.b32.xlu0 %v691, 120
        %v1106 = vpop.permute.xlu0 %1105
        %1107 = vrot.lane.b32.xlu0 %v691, 88
        %v1108 = vpop.permute.xlu0 %1107
        %v1109 = vsel %vm697, %v1106, 0
        %v1111 = vsel %vm697, %v1108, 0
        %1113 = vmatprep.subr.mxu0 0.0
        %1114 = vmatpush1.xpose.msra.mxu0 %v1111
        %1115 = vmatprep.subr.mxu0 0.0
        %1116 = vmatpush1.xpose.msra.mxu0 0.0
        %1117 = vmatprep.subr.mxu0 0.0
        %1118 = vmatpush1.xpose.msra.mxu0 0.0
        %1119 = vmatprep.subr.mxu0 0.0
        %1120 = vmatpush1.xpose.msra.mxu0 0.0
        %1121 = vmatprep.subr.mxu0 0.0
        %1122 = vmatpush1.xpose.msra.mxu0 0.0
        %1123 = vmatprep.subr.mxu0 0.0
        %1124 = vmatpush1.xpose.msra.mxu0 0.0
        %1125 = vmatprep.subr.mxu0 0.0
        %1126 = vmatpush1.xpose.msra.mxu0 0.0
        %1127 = vmatprep.subr.mxu0 0.0
        %1128 = vmatpush1.xpose.msra.mxu0 0.0
        %1129 = vmatprep.subr.mxu0 0.0
        %1130 = vmatpush1.xpose.msra.mxu0 0.0
        %1131 = vmatprep.subr.mxu0 0.0
        %1132 = vmatpush1.xpose.msra.mxu0 0.0
        %1133 = vmatprep.subr.mxu0 0.0
        %1134 = vmatpush1.xpose.msra.mxu0 0.0
        %1135 = vmatprep.subr.mxu0 0.0
        %1136 = vmatpush1.xpose.msra.mxu0 0.0
        %1137 = vmatprep.subr.mxu0 0.0
        %1138 = vmatpush1.xpose.msra.mxu0 0.0
        %1139 = vmatprep.subr.mxu0 0.0
        %1140 = vmatpush1.xpose.msra.mxu0 0.0
        %1141 = vmatprep.subr.mxu0 0.0
        %1142 = vmatpush1.xpose.msra.mxu0 0.0
        %1143 = vmatprep.subr.mxu0 0.0
        %1144 = vmatpush1.xpose.msra.mxu0 0.0
        %1145 = vmatprep.subr.mxu0 0.0
        %1146 = vmatpush1.xpose.msra.mxu0 0.0
        %1147 = vmatprep.subr.mxu0 0.0
        %1148 = vmatpush1.xpose.msra.mxu0 0.0
        %1149 = vmatprep.subr.mxu0 0.0
        %1150 = vmatpush1.xpose.msra.mxu0 0.0
        %1151 = vmatprep.subr.mxu0 0.0
        %1152 = vmatpush1.xpose.msra.mxu0 0.0
        %1153 = vmatprep.subr.mxu0 0.0
        %1154 = vmatpush1.xpose.msra.mxu0 0.0
        %1155 = vmatprep.subr.mxu0 0.0
        %1156 = vmatpush1.xpose.msra.mxu0 0.0
        %1157 = vmatprep.subr.mxu0 0.0
        %1158 = vmatpush1.xpose.msra.mxu0 0.0
        %1159 = vmatprep.subr.mxu0 0.0
        %1160 = vmatpush1.xpose.msra.mxu0 0.0
        %1161 = vmatprep.subr.mxu0 0.0
        %1162 = vmatpush1.xpose.msra.mxu0 0.0
        %1163 = vmatprep.subr.mxu0 0.0
        %1164 = vmatpush1.xpose.msra.mxu0 0.0
        %1165 = vmatprep.subr.mxu0 0.0
        %1166 = vmatpush1.xpose.msra.mxu0 0.0
        %1167 = vmatprep.subr.mxu0 0.0
        %1168 = vmatpush1.xpose.msra.mxu0 0.0
        %1169 = vmatprep.subr.mxu0 0.0
        %1170 = vmatpush1.xpose.msra.mxu0 0.0
        %1171 = vmatprep.subr.mxu0 0.0
        %1172 = vmatpush1.xpose.msra.mxu0 0.0
        %1173 = vmatprep.subr.mxu0 0.0
        %1174 = vmatpush1.xpose.msra.mxu0 0.0
        %1175 = vmatprep.subr.mxu0 0.0
        %1176 = vmatpush1.xpose.msra.mxu0 0.0
        %1177 = vmatprep.mubr.f32.mxu0 0.0
        %1178 = vmatmul.mubr.f32.gmra.mrb[0].mxu0 %v1109
        %v1179 = vpop.f32.mrb[0].mxu0
        %v1180 = vadd.f32 0.0, %v1179
        %v1181 = vpop.f32.mrb[0].mxu0
        %1182 = vdwg.mxu0
        %v1183 = vmul.f32 %v1102, 0.35355338
        %v1184 = vmul.f32 %v1180, 0.35355338
        %v1185 = vadd.f32 %v1183, %v594
        %v1186 = vadd.f32 %v1184, %v598
        %v1187 = vsel %vm697, %v1185, -inf
        %1188 = vmax.xlane.f32.xlu0 %v1187
        %v1189 = vpop.xlane.xlu0 %1188
        %v1190 = vsel %vm697, %v1186, -inf
        %1191 = vmax.xlane.f32.xlu0 %v1190
        %v1192 = vpop.xlane.xlu0 %1191
        %v1193 = vsub.f32 %v1185, %v1189
        %v1194 = vsub.f32 %v1186, %v1192
        %v1195 = vmul.f32 %v1193, 1.442695
        %v1196 = vpow.pop %v1195
        %v1197 = vmul.f32 %v1194, 1.442695
        %v1198 = vpow.pop %v1197
        %v1199 = vsel %vm697, %v1196, 0.0
        %1200 = vadd.xlane.f32.xlu0 %v1199
        %v1201 = vpop.xlane.xlu0 %1200
        %v1202 = vsel %vm697, %v1198, 0.0
        %1203 = vadd.xlane.f32.xlu0 %v1202
        %v1204 = vpop.xlane.xlu0 %1203
        %v1205 = vrcp.pop %v1201
        %v1206 = vrcp.pop %v1204
        %v1207 = vmul.f32 %v1196, %v1205
        %v1208 = vmul.f32 %v1198, %v1206
        %1209 = vrot.lane.b32.xlu0 %v686, 56
        %v1210 = vpop.permute.xlu0 %1209
        %v1213 = vsel %vm697, %v1207, 0
        %1215 = vmatprep.subr.mxu0 0.0
        %1216 = vmatpush1.msra.mxu0 %v1210
        %1217 = vmatprep.subr.mxu0 0.0
        %1218 = vmatpush1.msra.mxu0 0.0
        %1219 = vmatprep.subr.mxu0 0.0
        %1220 = vmatpush1.msra.mxu0 0.0
        %1221 = vmatprep.subr.mxu0 0.0
        %1222 = vmatpush1.msra.mxu0 0.0
        %1223 = vmatprep.subr.mxu0 0.0
        %1224 = vmatpush1.msra.mxu0 0.0
        %1225 = vmatprep.subr.mxu0 0.0
        %1226 = vmatpush1.msra.mxu0 0.0
        %1227 = vmatprep.subr.mxu0 0.0
        %1228 = vmatpush1.msra.mxu0 0.0
        %1229 = vmatprep.subr.mxu0 0.0
        %1230 = vmatpush1.msra.mxu0 0.0
        %1231 = vmatprep.subr.mxu0 0.0
        %1232 = vmatpush1.msra.mxu0 0.0
        %1233 = vmatprep.subr.mxu0 0.0
        %1234 = vmatpush1.msra.mxu0 0.0
        %1235 = vmatprep.subr.mxu0 0.0
        %1236 = vmatpush1.msra.mxu0 0.0
        %1237 = vmatprep.subr.mxu0 0.0
        %1238 = vmatpush1.msra.mxu0 0.0
        %1239 = vmatprep.subr.mxu0 0.0
        %1240 = vmatpush1.msra.mxu0 0.0
        %1241 = vmatprep.subr.mxu0 0.0
        %1242 = vmatpush1.msra.mxu0 0.0
        %1243 = vmatprep.subr.mxu0 0.0
        %1244 = vmatpush1.msra.mxu0 0.0
        %1245 = vmatprep.subr.mxu0 0.0
        %1246 = vmatpush1.msra.mxu0 0.0
        %1247 = vmatprep.subr.mxu0 0.0
        %1248 = vmatpush1.msra.mxu0 0.0
        %1249 = vmatprep.subr.mxu0 0.0
        %1250 = vmatpush1.msra.mxu0 0.0
        %1251 = vmatprep.subr.mxu0 0.0
        %1252 = vmatpush1.msra.mxu0 0.0
        %1253 = vmatprep.subr.mxu0 0.0
        %1254 = vmatpush1.msra.mxu0 0.0
        %1255 = vmatprep.subr.mxu0 0.0
        %1256 = vmatpush1.msra.mxu0 0.0
        %1257 = vmatprep.subr.mxu0 0.0
        %1258 = vmatpush1.msra.mxu0 0.0
        %1259 = vmatprep.subr.mxu0 0.0
        %1260 = vmatpush1.msra.mxu0 0.0
        %1261 = vmatprep.subr.mxu0 0.0
        %1262 = vmatpush1.msra.mxu0 0.0
        %1263 = vmatprep.subr.mxu0 0.0
        %1264 = vmatpush1.msra.mxu0 0.0
        %1265 = vmatprep.subr.mxu0 0.0
        %1266 = vmatpush1.msra.mxu0 0.0
        %1267 = vmatprep.subr.mxu0 0.0
        %1268 = vmatpush1.msra.mxu0 0.0
        %1269 = vmatprep.subr.mxu0 0.0
        %1270 = vmatpush1.msra.mxu0 0.0
        %1271 = vmatprep.subr.mxu0 0.0
        %1272 = vmatpush1.msra.mxu0 0.0
        %1273 = vmatprep.subr.mxu0 0.0
        %1274 = vmatpush1.msra.mxu0 0.0
        %1275 = vmatprep.subr.mxu0 0.0
        %1276 = vmatpush1.msra.mxu0 0.0
        %1277 = vmatprep.subr.mxu0 0.0
        %1278 = vmatpush1.msra.mxu0 0.0
        %1279 = vmatprep.mubr.f32.mxu0 0.0
        %1280 = vmatmul.mubr.f32.gmra.mrb[0].mxu0 %v1213
        %v1281 = vpop.f32.mrb[0].mxu0
        %v1282 = vadd.f32 0.0, %v1281
        %v1283 = vpop.f32.mrb[0].mxu0
        %1284 = vdwg.mxu0
        %1285 = vrot.lane.b32.xlu0 %v691, 56
        %v1286 = vpop.permute.xlu0 %1285
        %v1289 = vsel %vm697, %v1208, 0
        %1291 = vmatprep.subr.mxu0 0.0
        %1292 = vmatpush1.msra.mxu0 %v1286
        %1293 = vmatprep.subr.mxu0 0.0
        %1294 = vmatpush1.msra.mxu0 0.0
        %1295 = vmatprep.subr.mxu0 0.0
        %1296 = vmatpush1.msra.mxu0 0.0
        %1297 = vmatprep.subr.mxu0 0.0
        %1298 = vmatpush1.msra.mxu0 0.0
        %1299 = vmatprep.subr.mxu0 0.0
        %1300 = vmatpush1.msra.mxu0 0.0
        %1301 = vmatprep.subr.mxu0 0.0
        %1302 = vmatpush1.msra.mxu0 0.0
        %1303 = vmatprep.subr.mxu0 0.0
        %1304 = vmatpush1.msra.mxu0 0.0
        %1305 = vmatprep.subr.mxu0 0.0
        %1306 = vmatpush1.msra.mxu0 0.0
        %1307 = vmatprep.subr.mxu0 0.0
        %1308 = vmatpush1.msra.mxu0 0.0
        %1309 = vmatprep.subr.mxu0 0.0
        %1310 = vmatpush1.msra.mxu0 0.0
        %1311 = vmatprep.subr.mxu0 0.0
        %1312 = vmatpush1.msra.mxu0 0.0
        %1313 = vmatprep.subr.mxu0 0.0
        %1314 = vmatpush1.msra.mxu0 0.0
        %1315 = vmatprep.subr.mxu0 0.0
        %1316 = vmatpush1.msra.mxu0 0.0
        %1317 = vmatprep.subr.mxu0 0.0
        %1318 = vmatpush1.msra.mxu0 0.0
        %1319 = vmatprep.subr.mxu0 0.0
        %1320 = vmatpush1.msra.mxu0 0.0
        %1321 = vmatprep.subr.mxu0 0.0
        %1322 = vmatpush1.msra.mxu0 0.0
        %1323 = vmatprep.subr.mxu0 0.0
        %1324 = vmatpush1.msra.mxu0 0.0
        %1325 = vmatprep.subr.mxu0 0.0
        %1326 = vmatpush1.msra.mxu0 0.0
        %1327 = vmatprep.subr.mxu0 0.0
        %1328 = vmatpush1.msra.mxu0 0.0
        %1329 = vmatprep.subr.mxu0 0.0
        %1330 = vmatpush1.msra.mxu0 0.0
        %1331 = vmatprep.subr.mxu0 0.0
        %1332 = vmatpush1.msra.mxu0 0.0
        %1333 = vmatprep.subr.mxu0 0.0
        %1334 = vmatpush1.msra.mxu0 0.0
        %1335 = vmatprep.subr.mxu0 0.0
        %1336 = vmatpush1.msra.mxu0 0.0
        %1337 = vmatprep.subr.mxu0 0.0
        %1338 = vmatpush1.msra.mxu0 0.0
        %1339 = vmatprep.subr.mxu0 0.0
        %1340 = vmatpush1.msra.mxu0 0.0
        %1341 = vmatprep.subr.mxu0 0.0
        %1342 = vmatpush1.msra.mxu0 0.0
        %1343 = vmatprep.subr.mxu0 0.0
        %1344 = vmatpush1.msra.mxu0 0.0
        %1345 = vmatprep.subr.mxu0 0.0
        %1346 = vmatpush1.msra.mxu0 0.0
        %1347 = vmatprep.subr.mxu0 0.0
        %1348 = vmatpush1.msra.mxu0 0.0
        %1349 = vmatprep.subr.mxu0 0.0
        %1350 = vmatpush1.msra.mxu0 0.0
        %1351 = vmatprep.subr.mxu0 0.0
        %1352 = vmatpush1.msra.mxu0 0.0
        %1353 = vmatprep.subr.mxu0 0.0
        %1354 = vmatpush1.msra.mxu0 0.0
        %1355 = vmatprep.mubr.f32.mxu0 0.0
        %1356 = vmatmul.mubr.f32.gmra.mrb[0].mxu0 %v1289
        %v1357 = vpop.f32.mrb[0].mxu0
        %v1358 = vadd.f32 0.0, %v1357
        %v1359 = vpop.f32.mrb[0].mxu0
        %1360 = vdwg.mxu0
        %1361 = vrot.lane.b32.xlu0 %v686, 112
        %v1362 = vpop.permute.xlu0 %1361
        %1363 = vrot.lane.b32.xlu0 %v686, 80
        %v1364 = vpop.permute.xlu0 %1363
        %v1365 = vsel %vm697, %v1362, 0
        %v1367 = vsel %vm697, %v1364, 0
        %1369 = vmatprep.subr.mxu0 0.0
        %1370 = vmatpush1.xpose.msra.mxu0 %v1367
        %1371 = vmatprep.subr.mxu0 0.0
        %1372 = vmatpush1.xpose.msra.mxu0 0.0
        %1373 = vmatprep.subr.mxu0 0.0
        %1374 = vmatpush1.xpose.msra.mxu0 0.0
        %1375 = vmatprep.subr.mxu0 0.0
        %1376 = vmatpush1.xpose.msra.mxu0 0.0
        %1377 = vmatprep.subr.mxu0 0.0
        %1378 = vmatpush1.xpose.msra.mxu0 0.0
        %1379 = vmatprep.subr.mxu0 0.0
        %1380 = vmatpush1.xpose.msra.mxu0 0.0
        %1381 = vmatprep.subr.mxu0 0.0
        %1382 = vmatpush1.xpose.msra.mxu0 0.0
        %1383 = vmatprep.subr.mxu0 0.0
        %1384 = vmatpush1.xpose.msra.mxu0 0.0
        %1385 = vmatprep.subr.mxu0 0.0
        %1386 = vmatpush1.xpose.msra.mxu0 0.0
        %1387 = vmatprep.subr.mxu0 0.0
        %1388 = vmatpush1.xpose.msra.mxu0 0.0
        %1389 = vmatprep.subr.mxu0 0.0
        %1390 = vmatpush1.xpose.msra.mxu0 0.0
        %1391 = vmatprep.subr.mxu0 0.0
        %1392 = vmatpush1.xpose.msra.mxu0 0.0
        %1393 = vmatprep.subr.mxu0 0.0
        %1394 = vmatpush1.xpose.msra.mxu0 0.0
        %1395 = vmatprep.subr.mxu0 0.0
        %1396 = vmatpush1.xpose.msra.mxu0 0.0
        %1397 = vmatprep.subr.mxu0 0.0
        %1398 = vmatpush1.xpose.msra.mxu0 0.0
        %1399 = vmatprep.subr.mxu0 0.0
        %1400 = vmatpush1.xpose.msra.mxu0 0.0
        %1401 = vmatprep.subr.mxu0 0.0
        %1402 = vmatpush1.xpose.msra.mxu0 0.0
        %1403 = vmatprep.subr.mxu0 0.0
        %1404 = vmatpush1.xpose.msra.mxu0 0.0
        %1405 = vmatprep.subr.mxu0 0.0
        %1406 = vmatpush1.xpose.msra.mxu0 0.0
        %1407 = vmatprep.subr.mxu0 0.0
        %1408 = vmatpush1.xpose.msra.mxu0 0.0
        %1409 = vmatprep.subr.mxu0 0.0
        %1410 = vmatpush1.xpose.msra.mxu0 0.0
        %1411 = vmatprep.subr.mxu0 0.0
        %1412 = vmatpush1.xpose.msra.mxu0 0.0
        %1413 = vmatprep.subr.mxu0 0.0
        %1414 = vmatpush1.xpose.msra.mxu0 0.0
        %1415 = vmatprep.subr.mxu0 0.0
        %1416 = vmatpush1.xpose.msra.mxu0 0.0
        %1417 = vmatprep.subr.mxu0 0.0
        %1418 = vmatpush1.xpose.msra.mxu0 0.0
        %1419 = vmatprep.subr.mxu0 0.0
        %1420 = vmatpush1.xpose.msra.mxu0 0.0
        %1421 = vmatprep.subr.mxu0 0.0
        %1422 = vmatpush1.xpose.msra.mxu0 0.0
        %1423 = vmatprep.subr.mxu0 0.0
        %1424 = vmatpush1.xpose.msra.mxu0 0.0
        %1425 = vmatprep.subr.mxu0 0.0
        %1426 = vmatpush1.xpose.msra.mxu0 0.0
        %1427 = vmatprep.subr.mxu0 0.0
        %1428 = vmatpush1.xpose.msra.mxu0 0.0
        %1429 = vmatprep.subr.mxu0 0.0
        %1430 = vmatpush1.xpose.msra.mxu0 0.0
        %1431 = vmatprep.subr.mxu0 0.0
        %1432 = vmatpush1.xpose.msra.mxu0 0.0
        %1433 = vmatprep.mubr.f32.mxu0 0.0
        %1434 = vmatmul.mubr.f32.gmra.mrb[0].mxu0 %v1365
        %v1435 = vpop.f32.mrb[0].mxu0
        %v1436 = vadd.f32 0.0, %v1435
        %v1437 = vpop.f32.mrb[0].mxu0
        %1438 = vdwg.mxu0
        %1439 = vrot.lane.b32.xlu0 %v691, 112
        %v1440 = vpop.permute.xlu0 %1439
        %1441 = vrot.lane.b32.xlu0 %v691, 80
        %v1442 = vpop.permute.xlu0 %1441
        %v1443 = vsel %vm697, %v1440, 0
        %v1445 = vsel %vm697, %v1442, 0
        %1447 = vmatprep.subr.mxu0 0.0
        %1448 = vmatpush1.xpose.msra.mxu0 %v1445
        %1449 = vmatprep.subr.mxu0 0.0
        %1450 = vmatpush1.xpose.msra.mxu0 0.0
        %1451 = vmatprep.subr.mxu0 0.0
        %1452 = vmatpush1.xpose.msra.mxu0 0.0
        %1453 = vmatprep.subr.mxu0 0.0
        %1454 = vmatpush1.xpose.msra.mxu0 0.0
        %1455 = vmatprep.subr.mxu0 0.0
        %1456 = vmatpush1.xpose.msra.mxu0 0.0
        %1457 = vmatprep.subr.mxu0 0.0
        %1458 = vmatpush1.xpose.msra.mxu0 0.0
        %1459 = vmatprep.subr.mxu0 0.0
        %1460 = vmatpush1.xpose.msra.mxu0 0.0
        %1461 = vmatprep.subr.mxu0 0.0
        %1462 = vmatpush1.xpose.msra.mxu0 0.0
        %1463 = vmatprep.subr.mxu0 0.0
        %1464 = vmatpush1.xpose.msra.mxu0 0.0
        %1465 = vmatprep.subr.mxu0 0.0
        %1466 = vmatpush1.xpose.msra.mxu0 0.0
        %1467 = vmatprep.subr.mxu0 0.0
        %1468 = vmatpush1.xpose.msra.mxu0 0.0
        %1469 = vmatprep.subr.mxu0 0.0
        %1470 = vmatpush1.xpose.msra.mxu0 0.0
        %1471 = vmatprep.subr.mxu0 0.0
        %1472 = vmatpush1.xpose.msra.mxu0 0.0
        %1473 = vmatprep.subr.mxu0 0.0
        %1474 = vmatpush1.xpose.msra.mxu0 0.0
        %1475 = vmatprep.subr.mxu0 0.0
        %1476 = vmatpush1.xpose.msra.mxu0 0.0
        %1477 = vmatprep.subr.mxu0 0.0
        %1478 = vmatpush1.xpose.msra.mxu0 0.0
        %1479 = vmatprep.subr.mxu0 0.0
        %1480 = vmatpush1.xpose.msra.mxu0 0.0
        %1481 = vmatprep.subr.mxu0 0.0
        %1482 = vmatpush1.xpose.msra.mxu0 0.0
        %1483 = vmatprep.subr.mxu0 0.0
        %1484 = vmatpush1.xpose.msra.mxu0 0.0
        %1485 = vmatprep.subr.mxu0 0.0
        %1486 = vmatpush1.xpose.msra.mxu0 0.0
        %1487 = vmatprep.subr.mxu0 0.0
        %1488 = vmatpush1.xpose.msra.mxu0 0.0
        %1489 = vmatprep.subr.mxu0 0.0
        %1490 = vmatpush1.xpose.msra.mxu0 0.0
        %1491 = vmatprep.subr.mxu0 0.0
        %1492 = vmatpush1.xpose.msra.mxu0 0.0
        %1493 = vmatprep.subr.mxu0 0.0
        %1494 = vmatpush1.xpose.msra.mxu0 0.0
        %1495 = vmatprep.subr.mxu0 0.0
        %1496 = vmatpush1.xpose.msra.mxu0 0.0
        %1497 = vmatprep.subr.mxu0 0.0
        %1498 = vmatpush1.xpose.msra.mxu0 0.0
        %1499 = vmatprep.subr.mxu0 0.0
        %1500 = vmatpush1.xpose.msra.mxu0 0.0
        %1501 = vmatprep.subr.mxu0 0.0
        %1502 = vmatpush1.xpose.msra.mxu0 0.0
        %1503 = vmatprep.subr.mxu0 0.0
        %1504 = vmatpush1.xpose.msra.mxu0 0.0
        %1505 = vmatprep.subr.mxu0 0.0
        %1506 = vmatpush1.xpose.msra.mxu0 0.0
        %1507 = vmatprep.subr.mxu0 0.0
        %1508 = vmatpush1.xpose.msra.mxu0 0.0
        %1509 = vmatprep.subr.mxu0 0.0
        %1510 = vmatpush1.xpose.msra.mxu0 0.0
        %1511 = vmatprep.mubr.f32.mxu0 0.0
        %1512 = vmatmul.mubr.f32.gmra.mrb[0].mxu0 %v1443
        %v1513 = vpop.f32.mrb[0].mxu0
        %v1514 = vadd.f32 0.0, %v1513
        %v1515 = vpop.f32.mrb[0].mxu0
        %1516 = vdwg.mxu0
        %v1517 = vmul.f32 %v1436, 0.35355338
        %v1518 = vmul.f32 %v1514, 0.35355338
        %v1519 = vadd.f32 %v1517, %v594
        %v1520 = vadd.f32 %v1518, %v598
        %v1521 = vsel %vm697, %v1519, -inf
        %1522 = vmax.xlane.f32.xlu0 %v1521
        %v1523 = vpop.xlane.xlu0 %1522
        %v1524 = vsel %vm697, %v1520, -inf
        %1525 = vmax.xlane.f32.xlu0 %v1524
        %v1526 = vpop.xlane.xlu0 %1525
        %v1527 = vsub.f32 %v1519, %v1523
        %v1528 = vsub.f32 %v1520, %v1526
        %v1529 = vmul.f32 %v1527, 1.442695
        %v1530 = vpow.pop %v1529
        %v1531 = vmul.f32 %v1528, 1.442695
        %v1532 = vpow.pop %v1531
        %v1533 = vsel %vm697, %v1530, 0.0
        %1534 = vadd.xlane.f32.xlu0 %v1533
        %v1535 = vpop.xlane.xlu0 %1534
        %v1536 = vsel %vm697, %v1532, 0.0
        %1537 = vadd.xlane.f32.xlu0 %v1536
        %v1538 = vpop.xlane.xlu0 %1537
        %v1539 = vrcp.pop %v1535
        %v1540 = vrcp.pop %v1538
        %v1541 = vmul.f32 %v1530, %v1539
        %v1542 = vmul.f32 %v1532, %v1540
        %1543 = vrot.lane.b32.xlu0 %v686, 48
        %v1544 = vpop.permute.xlu0 %1543
        %v1547 = vsel %vm697, %v1541, 0
        %1549 = vmatprep.subr.mxu0 0.0
        %1550 = vmatpush1.msra.mxu0 %v1544
        %1551 = vmatprep.subr.mxu0 0.0
        %1552 = vmatpush1.msra.mxu0 0.0
        %1553 = vmatprep.subr.mxu0 0.0
        %1554 = vmatpush1.msra.mxu0 0.0
        %1555 = vmatprep.subr.mxu0 0.0
        %1556 = vmatpush1.msra.mxu0 0.0
        %1557 = vmatprep.subr.mxu0 0.0
        %1558 = vmatpush1.msra.mxu0 0.0
        %1559 = vmatprep.subr.mxu0 0.0
        %1560 = vmatpush1.msra.mxu0 0.0
        %1561 = vmatprep.subr.mxu0 0.0
        %1562 = vmatpush1.msra.mxu0 0.0
        %1563 = vmatprep.subr.mxu0 0.0
        %1564 = vmatpush1.msra.mxu0 0.0
        %1565 = vmatprep.subr.mxu0 0.0
        %1566 = vmatpush1.msra.mxu0 0.0
        %1567 = vmatprep.subr.mxu0 0.0
        %1568 = vmatpush1.msra.mxu0 0.0
        %1569 = vmatprep.subr.mxu0 0.0
        %1570 = vmatpush1.msra.mxu0 0.0
        %1571 = vmatprep.subr.mxu0 0.0
        %1572 = vmatpush1.msra.mxu0 0.0
        %1573 = vmatprep.subr.mxu0 0.0
        %1574 = vmatpush1.msra.mxu0 0.0
        %1575 = vmatprep.subr.mxu0 0.0
        %1576 = vmatpush1.msra.mxu0 0.0
        %1577 = vmatprep.subr.mxu0 0.0
        %1578 = vmatpush1.msra.mxu0 0.0
        %1579 = vmatprep.subr.mxu0 0.0
        %1580 = vmatpush1.msra.mxu0 0.0
        %1581 = vmatprep.subr.mxu0 0.0
        %1582 = vmatpush1.msra.mxu0 0.0
        %1583 = vmatprep.subr.mxu0 0.0
        %1584 = vmatpush1.msra.mxu0 0.0
        %1585 = vmatprep.subr.mxu0 0.0
        %1586 = vmatpush1.msra.mxu0 0.0
        %1587 = vmatprep.subr.mxu0 0.0
        %1588 = vmatpush1.msra.mxu0 0.0
        %1589 = vmatprep.subr.mxu0 0.0
        %1590 = vmatpush1.msra.mxu0 0.0
        %1591 = vmatprep.subr.mxu0 0.0
        %1592 = vmatpush1.msra.mxu0 0.0
        %1593 = vmatprep.subr.mxu0 0.0
        %1594 = vmatpush1.msra.mxu0 0.0
        %1595 = vmatprep.subr.mxu0 0.0
        %1596 = vmatpush1.msra.mxu0 0.0
        %1597 = vmatprep.subr.mxu0 0.0
        %1598 = vmatpush1.msra.mxu0 0.0
        %1599 = vmatprep.subr.mxu0 0.0
        %1600 = vmatpush1.msra.mxu0 0.0
        %1601 = vmatprep.subr.mxu0 0.0
        %1602 = vmatpush1.msra.mxu0 0.0
        %1603 = vmatprep.subr.mxu0 0.0
        %1604 = vmatpush1.msra.mxu0 0.0
        %1605 = vmatprep.subr.mxu0 0.0
        %1606 = vmatpush1.msra.mxu0 0.0
        %1607 = vmatprep.subr.mxu0 0.0
        %1608 = vmatpush1.msra.mxu0 0.0
        %1609 = vmatprep.subr.mxu0 0.0
        %1610 = vmatpush1.msra.mxu0 0.0
        %1611 = vmatprep.subr.mxu0 0.0
        %1612 = vmatpush1.msra.mxu0 0.0
        %1613 = vmatprep.mubr.f32.mxu0 0.0
        %1614 = vmatmul.mubr.f32.gmra.mrb[0].mxu0 %v1547
        %v1615 = vpop.f32.mrb[0].mxu0
        %v1616 = vadd.f32 0.0, %v1615
        %v1617 = vpop.f32.mrb[0].mxu0
        %1618 = vdwg.mxu0
        %1619 = vrot.lane.b32.xlu0 %v691, 48
        %v1620 = vpop.permute.xlu0 %1619
        %v1623 = vsel %vm697, %v1542, 0
        %1625 = vmatprep.subr.mxu0 0.0
        %1626 = vmatpush1.msra.mxu0 %v1620
        %1627 = vmatprep.subr.mxu0 0.0
        %1628 = vmatpush1.msra.mxu0 0.0
        %1629 = vmatprep.subr.mxu0 0.0
        %1630 = vmatpush1.msra.mxu0 0.0
        %1631 = vmatprep.subr.mxu0 0.0
        %1632 = vmatpush1.msra.mxu0 0.0
        %1633 = vmatprep.subr.mxu0 0.0
        %1634 = vmatpush1.msra.mxu0 0.0
        %1635 = vmatprep.subr.mxu0 0.0
        %1636 = vmatpush1.msra.mxu0 0.0
        %1637 = vmatprep.subr.mxu0 0.0
        %1638 = vmatpush1.msra.mxu0 0.0
        %1639 = vmatprep.subr.mxu0 0.0
        %1640 = vmatpush1.msra.mxu0 0.0
        %1641 = vmatprep.subr.mxu0 0.0
        %1642 = vmatpush1.msra.mxu0 0.0
        %1643 = vmatprep.subr.mxu0 0.0
        %1644 = vmatpush1.msra.mxu0 0.0
        %1645 = vmatprep.subr.mxu0 0.0
        %1646 = vmatpush1.msra.mxu0 0.0
        %1647 = vmatprep.subr.mxu0 0.0
        %1648 = vmatpush1.msra.mxu0 0.0
        %1649 = vmatprep.subr.mxu0 0.0
        %1650 = vmatpush1.msra.mxu0 0.0
        %1651 = vmatprep.subr.mxu0 0.0
        %1652 = vmatpush1.msra.mxu0 0.0
        %1653 = vmatprep.subr.mxu0 0.0
        %1654 = vmatpush1.msra.mxu0 0.0
        %1655 = vmatprep.subr.mxu0 0.0
        %1656 = vmatpush1.msra.mxu0 0.0
        %1657 = vmatprep.subr.mxu0 0.0
        %1658 = vmatpush1.msra.mxu0 0.0
        %1659 = vmatprep.subr.mxu0 0.0
        %1660 = vmatpush1.msra.mxu0 0.0
        %1661 = vmatprep.subr.mxu0 0.0
        %1662 = vmatpush1.msra.mxu0 0.0
        %1663 = vmatprep.subr.mxu0 0.0
        %1664 = vmatpush1.msra.mxu0 0.0
        %1665 = vmatprep.subr.mxu0 0.0
        %1666 = vmatpush1.msra.mxu0 0.0
        %1667 = vmatprep.subr.mxu0 0.0
        %1668 = vmatpush1.msra.mxu0 0.0
        %1669 = vmatprep.subr.mxu0 0.0
        %1670 = vmatpush1.msra.mxu0 0.0
        %1671 = vmatprep.subr.mxu0 0.0
        %1672 = vmatpush1.msra.mxu0 0.0
        %1673 = vmatprep.subr.mxu0 0.0
        %1674 = vmatpush1.msra.mxu0 0.0
        %1675 = vmatprep.subr.mxu0 0.0
        %1676 = vmatpush1.msra.mxu0 0.0
        %1677 = vmatprep.subr.mxu0 0.0
        %1678 = vmatpush1.msra.mxu0 0.0
        %1679 = vmatprep.subr.mxu0 0.0
        %1680 = vmatpush1.msra.mxu0 0.0
        %1681 = vmatprep.subr.mxu0 0.0
        %1682 = vmatpush1.msra.mxu0 0.0
        %1683 = vmatprep.subr.mxu0 0.0
        %1684 = vmatpush1.msra.mxu0 0.0
        %1685 = vmatprep.subr.mxu0 0.0
        %1686 = vmatpush1.msra.mxu0 0.0
        %1687 = vmatprep.subr.mxu0 0.0
        %1688 = vmatpush1.msra.mxu0 0.0
        %1689 = vmatprep.mubr.f32.mxu0 0.0
        %1690 = vmatmul.mubr.f32.gmra.mrb[0].mxu0 %v1623
        %v1691 = vpop.f32.mrb[0].mxu0
        %v1692 = vadd.f32 0.0, %v1691
        %v1693 = vpop.f32.mrb[0].mxu0
        %1694 = vdwg.mxu0
        %1695 = vrot.lane.b32.xlu0 %v686, 104
        %v1696 = vpop.permute.xlu0 %1695
        %1697 = vrot.lane.b32.xlu0 %v686, 72
        %v1698 = vpop.permute.xlu0 %1697
        %v1699 = vsel %vm697, %v1696, 0
        %v1701 = vsel %vm697, %v1698, 0
        %1703 = vmatprep.subr.mxu0 0.0
        %1704 = vmatpush1.xpose.msra.mxu0 %v1701
        %1705 = vmatprep.subr.mxu0 0.0
        %1706 = vmatpush1.xpose.msra.mxu0 0.0
        %1707 = vmatprep.subr.mxu0 0.0
        %1708 = vmatpush1.xpose.msra.mxu0 0.0
        %1709 = vmatprep.subr.mxu0 0.0
        %1710 = vmatpush1.xpose.msra.mxu0 0.0
        %1711 = vmatprep.subr.mxu0 0.0
        %1712 = vmatpush1.xpose.msra.mxu0 0.0
        %1713 = vmatprep.subr.mxu0 0.0
        %1714 = vmatpush1.xpose.msra.mxu0 0.0
        %1715 = vmatprep.subr.mxu0 0.0
        %1716 = vmatpush1.xpose.msra.mxu0 0.0
        %1717 = vmatprep.subr.mxu0 0.0
        %1718 = vmatpush1.xpose.msra.mxu0 0.0
        %1719 = vmatprep.subr.mxu0 0.0
        %1720 = vmatpush1.xpose.msra.mxu0 0.0
        %1721 = vmatprep.subr.mxu0 0.0
        %1722 = vmatpush1.xpose.msra.mxu0 0.0
        %1723 = vmatprep.subr.mxu0 0.0
        %1724 = vmatpush1.xpose.msra.mxu0 0.0
        %1725 = vmatprep.subr.mxu0 0.0
        %1726 = vmatpush1.xpose.msra.mxu0 0.0
        %1727 = vmatprep.subr.mxu0 0.0
        %1728 = vmatpush1.xpose.msra.mxu0 0.0
        %1729 = vmatprep.subr.mxu0 0.0
        %1730 = vmatpush1.xpose.msra.mxu0 0.0
        %1731 = vmatprep.subr.mxu0 0.0
        %1732 = vmatpush1.xpose.msra.mxu0 0.0
        %1733 = vmatprep.subr.mxu0 0.0
        %1734 = vmatpush1.xpose.msra.mxu0 0.0
        %1735 = vmatprep.subr.mxu0 0.0
        %1736 = vmatpush1.xpose.msra.mxu0 0.0
        %1737 = vmatprep.subr.mxu0 0.0
        %1738 = vmatpush1.xpose.msra.mxu0 0.0
        %1739 = vmatprep.subr.mxu0 0.0
        %1740 = vmatpush1.xpose.msra.mxu0 0.0
        %1741 = vmatprep.subr.mxu0 0.0
        %1742 = vmatpush1.xpose.msra.mxu0 0.0
        %1743 = vmatprep.subr.mxu0 0.0
        %1744 = vmatpush1.xpose.msra.mxu0 0.0
        %1745 = vmatprep.subr.mxu0 0.0
        %1746 = vmatpush1.xpose.msra.mxu0 0.0
        %1747 = vmatprep.subr.mxu0 0.0
        %1748 = vmatpush1.xpose.msra.mxu0 0.0
        %1749 = vmatprep.subr.mxu0 0.0
        %1750 = vmatpush1.xpose.msra.mxu0 0.0
        %1751 = vmatprep.subr.mxu0 0.0
        %1752 = vmatpush1.xpose.msra.mxu0 0.0
        %1753 = vmatprep.subr.mxu0 0.0
        %1754 = vmatpush1.xpose.msra.mxu0 0.0
        %1755 = vmatprep.subr.mxu0 0.0
        %1756 = vmatpush1.xpose.msra.mxu0 0.0
        %1757 = vmatprep.subr.mxu0 0.0
        %1758 = vmatpush1.xpose.msra.mxu0 0.0
        %1759 = vmatprep.subr.mxu0 0.0
        %1760 = vmatpush1.xpose.msra.mxu0 0.0
        %1761 = vmatprep.subr.mxu0 0.0
        %1762 = vmatpush1.xpose.msra.mxu0 0.0
        %1763 = vmatprep.subr.mxu0 0.0
        %1764 = vmatpush1.xpose.msra.mxu0 0.0
        %1765 = vmatprep.subr.mxu0 0.0
        %1766 = vmatpush1.xpose.msra.mxu0 0.0
        %1767 = vmatprep.mubr.f32.mxu0 0.0
        %1768 = vmatmul.mubr.f32.gmra.mrb[0].mxu0 %v1699
        %v1769 = vpop.f32.mrb[0].mxu0
        %v1770 = vadd.f32 0.0, %v1769
        %v1771 = vpop.f32.mrb[0].mxu0
        %1772 = vdwg.mxu0
        %1773 = vrot.lane.b32.xlu0 %v691, 104
        %v1774 = vpop.permute.xlu0 %1773
        %1775 = vrot.lane.b32.xlu0 %v691, 72
        %v1776 = vpop.permute.xlu0 %1775
        %v1777 = vsel %vm697, %v1774, 0
        %v1779 = vsel %vm697, %v1776, 0
        %1781 = vmatprep.subr.mxu0 0.0
        %1782 = vmatpush1.xpose.msra.mxu0 %v1779
        %1783 = vmatprep.subr.mxu0 0.0
        %1784 = vmatpush1.xpose.msra.mxu0 0.0
        %1785 = vmatprep.subr.mxu0 0.0
        %1786 = vmatpush1.xpose.msra.mxu0 0.0
        %1787 = vmatprep.subr.mxu0 0.0
        %1788 = vmatpush1.xpose.msra.mxu0 0.0
        %1789 = vmatprep.subr.mxu0 0.0
        %1790 = vmatpush1.xpose.msra.mxu0 0.0
        %1791 = vmatprep.subr.mxu0 0.0
        %1792 = vmatpush1.xpose.msra.mxu0 0.0
        %1793 = vmatprep.subr.mxu0 0.0
        %1794 = vmatpush1.xpose.msra.mxu0 0.0
        %1795 = vmatprep.subr.mxu0 0.0
        %1796 = vmatpush1.xpose.msra.mxu0 0.0
        %1797 = vmatprep.subr.mxu0 0.0
        %1798 = vmatpush1.xpose.msra.mxu0 0.0
        %1799 = vmatprep.subr.mxu0 0.0
        %1800 = vmatpush1.xpose.msra.mxu0 0.0
        %1801 = vmatprep.subr.mxu0 0.0
        %1802 = vmatpush1.xpose.msra.mxu0 0.0
        %1803 = vmatprep.subr.mxu0 0.0
        %1804 = vmatpush1.xpose.msra.mxu0 0.0
        %1805 = vmatprep.subr.mxu0 0.0
        %1806 = vmatpush1.xpose.msra.mxu0 0.0
        %1807 = vmatprep.subr.mxu0 0.0
        %1808 = vmatpush1.xpose.msra.mxu0 0.0
        %1809 = vmatprep.subr.mxu0 0.0
        %1810 = vmatpush1.xpose.msra.mxu0 0.0
        %1811 = vmatprep.subr.mxu0 0.0
        %1812 = vmatpush1.xpose.msra.mxu0 0.0
        %1813 = vmatprep.subr.mxu0 0.0
        %1814 = vmatpush1.xpose.msra.mxu0 0.0
        %1815 = vmatprep.subr.mxu0 0.0
        %1816 = vmatpush1.xpose.msra.mxu0 0.0
        %1817 = vmatprep.subr.mxu0 0.0
        %1818 = vmatpush1.xpose.msra.mxu0 0.0
        %1819 = vmatprep.subr.mxu0 0.0
        %1820 = vmatpush1.xpose.msra.mxu0 0.0
        %1821 = vmatprep.subr.mxu0 0.0
        %1822 = vmatpush1.xpose.msra.mxu0 0.0
        %1823 = vmatprep.subr.mxu0 0.0
        %1824 = vmatpush1.xpose.msra.mxu0 0.0
        %1825 = vmatprep.subr.mxu0 0.0
        %1826 = vmatpush1.xpose.msra.mxu0 0.0
        %1827 = vmatprep.subr.mxu0 0.0
        %1828 = vmatpush1.xpose.msra.mxu0 0.0
        %1829 = vmatprep.subr.mxu0 0.0
        %1830 = vmatpush1.xpose.msra.mxu0 0.0
        %1831 = vmatprep.subr.mxu0 0.0
        %1832 = vmatpush1.xpose.msra.mxu0 0.0
        %1833 = vmatprep.subr.mxu0 0.0
        %1834 = vmatpush1.xpose.msra.mxu0 0.0
        %1835 = vmatprep.subr.mxu0 0.0
        %1836 = vmatpush1.xpose.msra.mxu0 0.0
        %1837 = vmatprep.subr.mxu0 0.0
        %1838 = vmatpush1.xpose.msra.mxu0 0.0
        %1839 = vmatprep.subr.mxu0 0.0
        %1840 = vmatpush1.xpose.msra.mxu0 0.0
        %1841 = vmatprep.subr.mxu0 0.0
        %1842 = vmatpush1.xpose.msra.mxu0 0.0
        %1843 = vmatprep.subr.mxu0 0.0
        %1844 = vmatpush1.xpose.msra.mxu0 0.0
        %1845 = vmatprep.mubr.f32.mxu0 0.0
        %1846 = vmatmul.mubr.f32.gmra.mrb[0].mxu0 %v1777
        %v1847 = vpop.f32.mrb[0].mxu0
        %v1848 = vadd.f32 0.0, %v1847
        %v1849 = vpop.f32.mrb[0].mxu0
        %1850 = vdwg.mxu0
        %v1851 = vmul.f32 %v1770, 0.35355338
        %v1852 = vmul.f32 %v1848, 0.35355338
        %v1853 = vadd.f32 %v1851, %v594
        %v1854 = vadd.f32 %v1852, %v598
        %v1855 = vsel %vm697, %v1853, -inf
        %1856 = vmax.xlane.f32.xlu0 %v1855
        %v1857 = vpop.xlane.xlu0 %1856
        %v1858 = vsel %vm697, %v1854, -inf
        %1859 = vmax.xlane.f32.xlu0 %v1858
        %v1860 = vpop.xlane.xlu0 %1859
        %v1861 = vsub.f32 %v1853, %v1857
        %v1862 = vsub.f32 %v1854, %v1860
        %v1863 = vmul.f32 %v1861, 1.442695
        %v1864 = vpow.pop %v1863
        %v1865 = vmul.f32 %v1862, 1.442695
        %v1866 = vpow.pop %v1865
        %v1867 = vsel %vm697, %v1864, 0.0
        %1868 = vadd.xlane.f32.xlu0 %v1867
        %v1869 = vpop.xlane.xlu0 %1868
        %v1870 = vsel %vm697, %v1866, 0.0
        %1871 = vadd.xlane.f32.xlu0 %v1870
        %v1872 = vpop.xlane.xlu0 %1871
        %v1873 = vrcp.pop %v1869
        %v1874 = vrcp.pop %v1872
        %v1875 = vmul.f32 %v1864, %v1873
        %v1876 = vmul.f32 %v1866, %v1874
        %1877 = vrot.lane.b32.xlu0 %v686, 40
        %v1878 = vpop.permute.xlu0 %1877
        %v1881 = vsel %vm697, %v1875, 0
        %1883 = vmatprep.subr.mxu0 0.0
        %1884 = vmatpush1.msra.mxu0 %v1878
        %1885 = vmatprep.subr.mxu0 0.0
        %1886 = vmatpush1.msra.mxu0 0.0
        %1887 = vmatprep.subr.mxu0 0.0
        %1888 = vmatpush1.msra.mxu0 0.0
        %1889 = vmatprep.subr.mxu0 0.0
        %1890 = vmatpush1.msra.mxu0 0.0
        %1891 = vmatprep.subr.mxu0 0.0
        %1892 = vmatpush1.msra.mxu0 0.0
        %1893 = vmatprep.subr.mxu0 0.0
        %1894 = vmatpush1.msra.mxu0 0.0
        %1895 = vmatprep.subr.mxu0 0.0
        %1896 = vmatpush1.msra.mxu0 0.0
        %1897 = vmatprep.subr.mxu0 0.0
        %1898 = vmatpush1.msra.mxu0 0.0
        %1899 = vmatprep.subr.mxu0 0.0
        %1900 = vmatpush1.msra.mxu0 0.0
        %1901 = vmatprep.subr.mxu0 0.0
        %1902 = vmatpush1.msra.mxu0 0.0
        %1903 = vmatprep.subr.mxu0 0.0
        %1904 = vmatpush1.msra.mxu0 0.0
        %1905 = vmatprep.subr.mxu0 0.0
        %1906 = vmatpush1.msra.mxu0 0.0
        %1907 = vmatprep.subr.mxu0 0.0
        %1908 = vmatpush1.msra.mxu0 0.0
        %1909 = vmatprep.subr.mxu0 0.0
        %1910 = vmatpush1.msra.mxu0 0.0
        %1911 = vmatprep.subr.mxu0 0.0
        %1912 = vmatpush1.msra.mxu0 0.0
        %1913 = vmatprep.subr.mxu0 0.0
        %1914 = vmatpush1.msra.mxu0 0.0
        %1915 = vmatprep.subr.mxu0 0.0
        %1916 = vmatpush1.msra.mxu0 0.0
        %1917 = vmatprep.subr.mxu0 0.0
        %1918 = vmatpush1.msra.mxu0 0.0
        %1919 = vmatprep.subr.mxu0 0.0
        %1920 = vmatpush1.msra.mxu0 0.0
        %1921 = vmatprep.subr.mxu0 0.0
        %1922 = vmatpush1.msra.mxu0 0.0
        %1923 = vmatprep.subr.mxu0 0.0
        %1924 = vmatpush1.msra.mxu0 0.0
        %1925 = vmatprep.subr.mxu0 0.0
        %1926 = vmatpush1.msra.mxu0 0.0
        %1927 = vmatprep.subr.mxu0 0.0
        %1928 = vmatpush1.msra.mxu0 0.0
        %1929 = vmatprep.subr.mxu0 0.0
        %1930 = vmatpush1.msra.mxu0 0.0
        %1931 = vmatprep.subr.mxu0 0.0
        %1932 = vmatpush1.msra.mxu0 0.0
        %1933 = vmatprep.subr.mxu0 0.0
        %1934 = vmatpush1.msra.mxu0 0.0
        %1935 = vmatprep.subr.mxu0 0.0
        %1936 = vmatpush1.msra.mxu0 0.0
        %1937 = vmatprep.subr.mxu0 0.0
        %1938 = vmatpush1.msra.mxu0 0.0
        %1939 = vmatprep.subr.mxu0 0.0
        %1940 = vmatpush1.msra.mxu0 0.0
        %1941 = vmatprep.subr.mxu0 0.0
        %1942 = vmatpush1.msra.mxu0 0.0
        %1943 = vmatprep.subr.mxu0 0.0
        %1944 = vmatpush1.msra.mxu0 0.0
        %1945 = vmatprep.subr.mxu0 0.0
        %1946 = vmatpush1.msra.mxu0 0.0
        %1947 = vmatprep.mubr.f32.mxu0 0.0
        %1948 = vmatmul.mubr.f32.gmra.mrb[0].mxu0 %v1881
        %v1949 = vpop.f32.mrb[0].mxu0
        %v1950 = vadd.f32 0.0, %v1949
        %v1951 = vpop.f32.mrb[0].mxu0
        %1952 = vdwg.mxu0
        %1953 = vrot.lane.b32.xlu0 %v691, 40
        %v1954 = vpop.permute.xlu0 %1953
        %v1957 = vsel %vm697, %v1876, 0
        %1959 = vmatprep.subr.mxu0 0.0
        %1960 = vmatpush1.msra.mxu0 %v1954
        %1961 = vmatprep.subr.mxu0 0.0
        %1962 = vmatpush1.msra.mxu0 0.0
        %1963 = vmatprep.subr.mxu0 0.0
        %1964 = vmatpush1.msra.mxu0 0.0
        %1965 = vmatprep.subr.mxu0 0.0
        %1966 = vmatpush1.msra.mxu0 0.0
        %1967 = vmatprep.subr.mxu0 0.0
        %1968 = vmatpush1.msra.mxu0 0.0
        %1969 = vmatprep.subr.mxu0 0.0
        %1970 = vmatpush1.msra.mxu0 0.0
        %1971 = vmatprep.subr.mxu0 0.0
        %1972 = vmatpush1.msra.mxu0 0.0
        %1973 = vmatprep.subr.mxu0 0.0
        %1974 = vmatpush1.msra.mxu0 0.0
        %1975 = vmatprep.subr.mxu0 0.0
        %1976 = vmatpush1.msra.mxu0 0.0
        %1977 = vmatprep.subr.mxu0 0.0
        %1978 = vmatpush1.msra.mxu0 0.0
        %1979 = vmatprep.subr.mxu0 0.0
        %1980 = vmatpush1.msra.mxu0 0.0
        %1981 = vmatprep.subr.mxu0 0.0
        %1982 = vmatpush1.msra.mxu0 0.0
        %1983 = vmatprep.subr.mxu0 0.0
        %1984 = vmatpush1.msra.mxu0 0.0
        %1985 = vmatprep.subr.mxu0 0.0
        %1986 = vmatpush1.msra.mxu0 0.0
        %1987 = vmatprep.subr.mxu0 0.0
        %1988 = vmatpush1.msra.mxu0 0.0
        %1989 = vmatprep.subr.mxu0 0.0
        %1990 = vmatpush1.msra.mxu0 0.0
        %1991 = vmatprep.subr.mxu0 0.0
        %1992 = vmatpush1.msra.mxu0 0.0
        %1993 = vmatprep.subr.mxu0 0.0
        %1994 = vmatpush1.msra.mxu0 0.0
        %1995 = vmatprep.subr.mxu0 0.0
        %1996 = vmatpush1.msra.mxu0 0.0
        %1997 = vmatprep.subr.mxu0 0.0
        %1998 = vmatpush1.msra.mxu0 0.0
        %1999 = vmatprep.subr.mxu0 0.0
        %2000 = vmatpush1.msra.mxu0 0.0
        %2001 = vmatprep.subr.mxu0 0.0
        %2002 = vmatpush1.msra.mxu0 0.0
        %2003 = vmatprep.subr.mxu0 0.0
        %2004 = vmatpush1.msra.mxu0 0.0
        %2005 = vmatprep.subr.mxu0 0.0
        %2006 = vmatpush1.msra.mxu0 0.0
        %2007 = vmatprep.subr.mxu0 0.0
        %2008 = vmatpush1.msra.mxu0 0.0
        %2009 = vmatprep.subr.mxu0 0.0
        %2010 = vmatpush1.msra.mxu0 0.0
        %2011 = vmatprep.subr.mxu0 0.0
        %2012 = vmatpush1.msra.mxu0 0.0
        %2013 = vmatprep.subr.mxu0 0.0
        %2014 = vmatpush1.msra.mxu0 0.0
        %2015 = vmatprep.subr.mxu0 0.0
        %2016 = vmatpush1.msra.mxu0 0.0
        %2017 = vmatprep.subr.mxu0 0.0
        %2018 = vmatpush1.msra.mxu0 0.0
        %2019 = vmatprep.subr.mxu0 0.0
        %2020 = vmatpush1.msra.mxu0 0.0
        %2021 = vmatprep.subr.mxu0 0.0
        %2022 = vmatpush1.msra.mxu0 0.0
        %2023 = vmatprep.mubr.f32.mxu0 0.0
        %2024 = vmatmul.mubr.f32.gmra.mrb[0].mxu0 %v1957
        %v2025 = vpop.f32.mrb[0].mxu0
        %v2026 = vadd.f32 0.0, %v2025
        %v2027 = vpop.f32.mrb[0].mxu0
        %2028 = vdwg.mxu0
        %2031 = vrot.lane.b32.xlu0 %v1282, 8
        %v2032 = vpop.permute.xlu0 %2031
        %2033 = vrot.lane.b32.xlu0 %v1358, 8
        %v2034 = vpop.permute.xlu0 %2033
        %2039 = vrot.lane.b32.xlu0 %v1616, 16
        %v2040 = vpop.permute.xlu0 %2039
        %2041 = vrot.lane.b32.xlu0 %v1692, 16
        %v2042 = vpop.permute.xlu0 %2041
        %2047 = vrot.lane.b32.xlu0 %v1950, 24
        %v2048 = vpop.permute.xlu0 %2047
        %2049 = vrot.lane.b32.xlu0 %v2026, 24
        %v2050 = vpop.permute.xlu0 %2049
        %v2053 = vsel %vm697, %v948, %v2032
        %v2054 = vsel %vm697, %v1024, %v2034
        %vm2055 = vcmask 130048
        %v2056 = vsel %vm2055, %v2053, %v2040
        %v2057 = vsel %vm2055, %v2054, %v2042
        %vm2058 = vcmask 195584
        %v2059 = vsel %vm2058, %v2056, %v2048
        %v2060 = vsel %vm2058, %v2057, %v2050
        %v2061 = vld [vmem:[%s502] sm:$0xff]
        %v2062 = vld [vmem:[%s502 + $0x8] sm:$0xff]
        %v2063 = vld [vmem:[%s502 + $0x10] sm:$0xff]
        %v2064 = vld [vmem:[%s502 + $0x18] sm:$0xff]
        %v2065 = vlaneseq
        %v2066 = vshrl.u32 %v2065, 7
        %v2067 = vsub.s32 0, %v2066
        %v2068 = vrot.slane %v586, %v2067
        %v2070 = vsel %vm612, %v2059, 0
        %v2073 = vsel %vm612, %v2060, 0
        %2075 = vmatprep.subr.mxu0 0.0
        %2076 = vmatpush1.msra.mxu0 %v2061
        %2077 = vmatprep.subr.mxu0 0.0
        %2078 = vmatpush1.msra.mxu0 %v2062
        %2079 = vmatprep.subr.mxu0 0.0
        %2080 = vmatpush1.msra.mxu0 %v2063
        %2081 = vmatprep.subr.mxu0 0.0
        %2082 = vmatpush1.msra.mxu0 %v2064
        %2083 = vmatprep.subr.mxu0 0.0
        %2084 = vmatpush1.msra.mxu0 0.0
        %2085 = vmatprep.subr.mxu0 0.0
        %2086 = vmatpush1.msra.mxu0 0.0
        %2087 = vmatprep.subr.mxu0 0.0
        %2088 = vmatpush1.msra.mxu0 0.0
        %2089 = vmatprep.subr.mxu0 0.0
        %2090 = vmatpush1.msra.mxu0 0.0
        %2091 = vmatprep.subr.mxu0 0.0
        %2092 = vmatpush1.msra.mxu0 0.0
        %2093 = vmatprep.subr.mxu0 0.0
        %2094 = vmatpush1.msra.mxu0 0.0
        %2095 = vmatprep.subr.mxu0 0.0
        %2096 = vmatpush1.msra.mxu0 0.0
        %2097 = vmatprep.subr.mxu0 0.0
        %2098 = vmatpush1.msra.mxu0 0.0
        %2099 = vmatprep.subr.mxu0 0.0
        %2100 = vmatpush1.msra.mxu0 0.0
        %2101 = vmatprep.subr.mxu0 0.0
        %2102 = vmatpush1.msra.mxu0 0.0
        %2103 = vmatprep.subr.mxu0 0.0
        %2104 = vmatpush1.msra.mxu0 0.0
        %2105 = vmatprep.subr.mxu0 0.0
        %2106 = vmatpush1.msra.mxu0 0.0
        %2107 = vmatprep.subr.mxu0 0.0
        %2108 = vmatpush1.msra.mxu0 0.0
        %2109 = vmatprep.subr.mxu0 0.0
        %2110 = vmatpush1.msra.mxu0 0.0
        %2111 = vmatprep.subr.mxu0 0.0
        %2112 = vmatpush1.msra.mxu0 0.0
        %2113 = vmatprep.subr.mxu0 0.0
        %2114 = vmatpush1.msra.mxu0 0.0
        %2115 = vmatprep.subr.mxu0 0.0
        %2116 = vmatpush1.msra.mxu0 0.0
        %2117 = vmatprep.subr.mxu0 0.0
        %2118 = vmatpush1.msra.mxu0 0.0
        %2119 = vmatprep.subr.mxu0 0.0
        %2120 = vmatpush1.msra.mxu0 0.0
        %2121 = vmatprep.subr.mxu0 0.0
        %2122 = vmatpush1.msra.mxu0 0.0
        %2123 = vmatprep.subr.mxu0 0.0
        %2124 = vmatpush1.msra.mxu0 0.0
        %2125 = vmatprep.subr.mxu0 0.0
        %2126 = vmatpush1.msra.mxu0 0.0
        %2127 = vmatprep.subr.mxu0 0.0
        %2128 = vmatpush1.msra.mxu0 0.0
        %2129 = vmatprep.subr.mxu0 0.0
        %2130 = vmatpush1.msra.mxu0 0.0
        %2131 = vmatprep.subr.mxu0 0.0
        %2132 = vmatpush1.msra.mxu0 0.0
        %2133 = vmatprep.subr.mxu0 0.0
        %2134 = vmatpush1.msra.mxu0 0.0
        %2135 = vmatprep.subr.mxu0 0.0
        %2136 = vmatpush1.msra.mxu0 0.0
        %2137 = vmatprep.subr.mxu0 0.0
        %2138 = vmatpush1.msra.mxu0 0.0
        %2139 = vmatprep.mubr.f32.mxu0 0.0
        %2140 = vmatmul.mubr.f32.gmra.mrb[0].mxu0 %v2070
        %v2141 = vpop.f32.mrb[0].mxu0
        %v2142 = vadd.f32 %v2068, %v2141
        %v2143 = vpop.f32.mrb[0].mxu0
        %2144 = vmatprep.mubr.f32.mxu0 0.0
        %2145 = vmatmul.mubr.f32.gmra.mrb[0].mxu0 %v2073
        %v2146 = vpop.f32.mrb[0].mxu0
        %v2147 = vadd.f32 %v2068, %v2146
        %v2148 = vpop.f32.mrb[0].mxu0
        %2149 = vdwg.mxu0
        %v2150 = vadd.f32 %v584, %v2142
        %v2151 = vadd.f32 %v585, %v2147
        %v2152 = vsel %vm612, %v2150, 0.0
        %2153 = vadd.xlane.f32.xlu0 %v2152
        %v2154 = vpop.xlane.xlu0 %2153
        %v2155 = vsel %vm612, %v2151, 0.0
        %2156 = vadd.xlane.f32.xlu0 %v2155
        %v2157 = vpop.xlane.xlu0 %2156
        %v2158 = vrcp.pop 32.0
        %v2159 = vmul.f32 %v2154, %v2158
        %v2160 = vmul.f32 %v2157, %v2158
        %v2161 = vsub.f32 %v2150, %v2159
        %v2162 = vsub.f32 %v2151, %v2160
        %v2163 = vmul.f32 %v2161, %v2161
        %v2164 = vmul.f32 %v2162, %v2162
        %v2165 = vsel %vm612, %v2163, 0.0
        %2166 = vadd.xlane.f32.xlu0 %v2165
        %v2167 = vpop.xlane.xlu0 %2166
        %v2168 = vsel %vm612, %v2164, 0.0
        %2169 = vadd.xlane.f32.xlu0 %v2168
        %v2170 = vpop.xlane.xlu0 %2169
        %v2171 = vmul.f32 %v2167, %v2158
        %v2172 = vmul.f32 %v2170, %v2158
        %v2173 = vadd.f32 %v2171, 1e-12
        %v2174 = vadd.f32 %v2172, 1e-12
        %v2175 = vrsqrt.pop %v2173
        %v2176 = vrsqrt.pop %v2174
        %v2177 = vmul.f32 %v2161, %v2175
        %v2178 = vmul.f32 %v2162, %v2176
        %v2179 = vlaneseq
        %v2180 = vshrl.u32 %v2179, 7
        %v2181 = vsub.s32 1, %v2180
        %v2182 = vrot.slane %v586, %v2181
        %v2183 = vmul.f32 %v2177, %v2182
        %v2184 = vmul.f32 %v2178, %v2182
        %v2185 = vlaneseq
        %v2186 = vshrl.u32 %v2185, 7
        %v2187 = vsub.s32 2, %v2186
        %v2188 = vrot.slane %v586, %v2187
        %v2189 = vadd.f32 %v2183, %v2188
        %v2190 = vadd.f32 %v2184, %v2188
        %v2191 = vld [vmem:[%s507] sm:$0xff]
        %v2192 = vld [vmem:[%s507 + $0x8] sm:$0xff]
        %v2193 = vld [vmem:[%s507 + $0x10] sm:$0xff]
        %v2194 = vld [vmem:[%s507 + $0x18] sm:$0xff]
        %v2195 = vld [vmem:[%s510] sm:$0x1]
        %v2197 = vlaneseq
        %v2198 = vshrl.u32 %v2197, 7
        %v2199 = vsub.s32 0, %v2198
        %v2200 = vrot.slane %v2195, %v2199
        %v2203 = vsel %vm612, %v2189, 0
        %v2206 = vsel %vm612, %v2190, 0
        %2208 = vmatprep.subr.mxu0 0.0
        %2209 = vmatpush1.msra.mxu0 %v2191
        %2210 = vmatprep.subr.mxu0 0.0
        %2211 = vmatpush1.msra.mxu0 %v2192
        %2212 = vmatprep.subr.mxu0 0.0
        %2213 = vmatpush1.msra.mxu0 %v2193
        %2214 = vmatprep.subr.mxu0 0.0
        %2215 = vmatpush1.msra.mxu0 %v2194
        %2216 = vmatprep.subr.mxu0 0.0
        %2217 = vmatpush1.msra.mxu0 0.0
        %2218 = vmatprep.subr.mxu0 0.0
        %2219 = vmatpush1.msra.mxu0 0.0
        %2220 = vmatprep.subr.mxu0 0.0
        %2221 = vmatpush1.msra.mxu0 0.0
        %2222 = vmatprep.subr.mxu0 0.0
        %2223 = vmatpush1.msra.mxu0 0.0
        %2224 = vmatprep.subr.mxu0 0.0
        %2225 = vmatpush1.msra.mxu0 0.0
        %2226 = vmatprep.subr.mxu0 0.0
        %2227 = vmatpush1.msra.mxu0 0.0
        %2228 = vmatprep.subr.mxu0 0.0
        %2229 = vmatpush1.msra.mxu0 0.0
        %2230 = vmatprep.subr.mxu0 0.0
        %2231 = vmatpush1.msra.mxu0 0.0
        %2232 = vmatprep.subr.mxu0 0.0
        %2233 = vmatpush1.msra.mxu0 0.0
        %2234 = vmatprep.subr.mxu0 0.0
        %2235 = vmatpush1.msra.mxu0 0.0
        %2236 = vmatprep.subr.mxu0 0.0
        %2237 = vmatpush1.msra.mxu0 0.0
        %2238 = vmatprep.subr.mxu0 0.0
        %2239 = vmatpush1.msra.mxu0 0.0
        %2240 = vmatprep.subr.mxu0 0.0
        %2241 = vmatpush1.msra.mxu0 0.0
        %2242 = vmatprep.subr.mxu0 0.0
        %2243 = vmatpush1.msra.mxu0 0.0
        %2244 = vmatprep.subr.mxu0 0.0
        %2245 = vmatpush1.msra.mxu0 0.0
        %2246 = vmatprep.subr.mxu0 0.0
        %2247 = vmatpush1.msra.mxu0 0.0
        %2248 = vmatprep.subr.mxu0 0.0
        %2249 = vmatpush1.msra.mxu0 0.0
        %2250 = vmatprep.subr.mxu0 0.0
        %2251 = vmatpush1.msra.mxu0 0.0
        %2252 = vmatprep.subr.mxu0 0.0
        %2253 = vmatpush1.msra.mxu0 0.0
        %2254 = vmatprep.subr.mxu0 0.0
        %2255 = vmatpush1.msra.mxu0 0.0
        %2256 = vmatprep.subr.mxu0 0.0
        %2257 = vmatpush1.msra.mxu0 0.0
        %2258 = vmatprep.subr.mxu0 0.0
        %2259 = vmatpush1.msra.mxu0 0.0
        %2260 = vmatprep.subr.mxu0 0.0
        %2261 = vmatpush1.msra.mxu0 0.0
        %2262 = vmatprep.subr.mxu0 0.0
        %2263 = vmatpush1.msra.mxu0 0.0
        %2264 = vmatprep.subr.mxu0 0.0
        %2265 = vmatpush1.msra.mxu0 0.0
        %2266 = vmatprep.subr.mxu0 0.0
        %2267 = vmatpush1.msra.mxu0 0.0
        %2268 = vmatprep.subr.mxu0 0.0
        %2269 = vmatpush1.msra.mxu0 0.0
        %2270 = vmatprep.subr.mxu0 0.0
        %2271 = vmatpush1.msra.mxu0 0.0
        %2272 = vmatprep.mubr.f32.mxu0 0.0
        %2273 = vmatmul.mubr.f32.gmra.mrb[0].mxu0 %v2203
        %v2274 = vpop.f32.mrb[0].mxu0
        %v2275 = vadd.f32 %v2200, %v2274
        %v2276 = vpop.f32.mrb[0].mxu0
        %2277 = vmatprep.mubr.f32.mxu0 0.0
        %2278 = vmatmul.mubr.f32.gmra.mrb[0].mxu0 %v2206
        %v2279 = vpop.f32.mrb[0].mxu0
        %v2280 = vadd.f32 %v2200, %v2279
        %v2281 = vpop.f32.mrb[0].mxu0
        %2282 = vdwg.mxu0
        %v2283 = vmul.f32 %v2275, %v2275
        %v2284 = vmul.f32 %v2280, %v2280
        %v2285 = vmul.f32 %v2275, %v2283
        %v2286 = vmul.f32 %v2280, %v2284
        %v2287 = vmul.f32 %v2285, 0.044715
        %v2288 = vmul.f32 %v2286, 0.044715
        %v2289 = vadd.f32 %v2275, %v2287
        %v2290 = vadd.f32 %v2280, %v2288
        %v2291 = vmul.f32 %v2289, 0.7978846
        %v2292 = vmul.f32 %v2290, 0.7978846
        %v2293 = vtanh.pop %v2291
        %v2294 = vtanh.pop %v2292
        %v2295 = vadd.f32 %v2293, 1.0
        %v2296 = vadd.f32 %v2294, 1.0
        %v2297 = vmul.f32 %v2295, 0.5
        %v2298 = vmul.f32 %v2296, 0.5
        %v2299 = vmul.f32 %v2275, %v2297
        %v2300 = vmul.f32 %v2280, %v2298
        %v2301 = vld [vmem:[%s515] sm:$0xff]
        %v2302 = vld [vmem:[%s515 + $0x8] sm:$0xff]
        %v2303 = vld [vmem:[%s515 + $0x10] sm:$0xff]
        %v2304 = vld [vmem:[%s515 + $0x18] sm:$0xff]
        %v2305 = vld [vmem:[%s515 + $0x20] sm:$0xff]
        %v2306 = vld [vmem:[%s515 + $0x28] sm:$0xff]
        %v2307 = vld [vmem:[%s515 + $0x30] sm:$0xff]
        %v2308 = vld [vmem:[%s515 + $0x38] sm:$0xff]
        %v2309 = vld [vmem:[%s515 + $0x40] sm:$0xff]
        %v2310 = vld [vmem:[%s515 + $0x48] sm:$0xff]
        %v2311 = vld [vmem:[%s515 + $0x50] sm:$0xff]
        %v2312 = vld [vmem:[%s515 + $0x58] sm:$0xff]
        %v2313 = vld [vmem:[%s515 + $0x60] sm:$0xff]
        %v2314 = vld [vmem:[%s515 + $0x68] sm:$0xff]
        %v2315 = vld [vmem:[%s515 + $0x70] sm:$0xff]
        %v2316 = vld [vmem:[%s515 + $0x78] sm:$0xff]
        %v2317 = vlaneseq
        %v2318 = vshrl.u32 %v2317, 7
        %v2319 = vsub.s32 3, %v2318
        %v2320 = vrot.slane %v586, %v2319
        %2321 = vmatprep.subr.mxu0 0.0
        %2322 = vmatpush1.msra.mxu0 %v2301
        %2323 = vmatprep.subr.mxu0 0.0
        %2324 = vmatpush1.msra.mxu0 %v2302
        %2325 = vmatprep.subr.mxu0 0.0
        %2326 = vmatpush1.msra.mxu0 %v2303
        %2327 = vmatprep.subr.mxu0 0.0
        %2328 = vmatpush1.msra.mxu0 %v2304
        %2329 = vmatprep.subr.mxu0 0.0
        %2330 = vmatpush1.msra.mxu0 %v2305
        %2331 = vmatprep.subr.mxu0 0.0
        %2332 = vmatpush1.msra.mxu0 %v2306
        %2333 = vmatprep.subr.mxu0 0.0
        %2334 = vmatpush1.msra.mxu0 %v2307
        %2335 = vmatprep.subr.mxu0 0.0
        %2336 = vmatpush1.msra.mxu0 %v2308
        %2337 = vmatprep.subr.mxu0 0.0
        %2338 = vmatpush1.msra.mxu0 %v2309
        %2339 = vmatprep.subr.mxu0 0.0
        %2340 = vmatpush1.msra.mxu0 %v2310
        %2341 = vmatprep.subr.mxu0 0.0
        %2342 = vmatpush1.msra.mxu0 %v2311
        %2343 = vmatprep.subr.mxu0 0.0
        %2344 = vmatpush1.msra.mxu0 %v2312
        %2345 = vmatprep.subr.mxu0 0.0
        %2346 = vmatpush1.msra.mxu0 %v2313
        %2347 = vmatprep.subr.mxu0 0.0
        %2348 = vmatpush1.msra.mxu0 %v2314
        %2349 = vmatprep.subr.mxu0 0.0
        %2350 = vmatpush1.msra.mxu0 %v2315
        %2351 = vmatprep.subr.mxu0 0.0
        %2352 = vmatpush1.msra.mxu0 %v2316
        %2353 = vmatprep.subr.mxu0 0.0
        %2354 = vmatpush1.msra.mxu0 0.0
        %2355 = vmatprep.subr.mxu0 0.0
        %2356 = vmatpush1.msra.mxu0 0.0
        %2357 = vmatprep.subr.mxu0 0.0
        %2358 = vmatpush1.msra.mxu0 0.0
        %2359 = vmatprep.subr.mxu0 0.0
        %2360 = vmatpush1.msra.mxu0 0.0
        %2361 = vmatprep.subr.mxu0 0.0
        %2362 = vmatpush1.msra.mxu0 0.0
        %2363 = vmatprep.subr.mxu0 0.0
        %2364 = vmatpush1.msra.mxu0 0.0
        %2365 = vmatprep.subr.mxu0 0.0
        %2366 = vmatpush1.msra.mxu0 0.0
        %2367 = vmatprep.subr.mxu0 0.0
        %2368 = vmatpush1.msra.mxu0 0.0
        %2369 = vmatprep.subr.mxu0 0.0
        %2370 = vmatpush1.msra.mxu0 0.0
        %2371 = vmatprep.subr.mxu0 0.0
        %2372 = vmatpush1.msra.mxu0 0.0
        %2373 = vmatprep.subr.mxu0 0.0
        %2374 = vmatpush1.msra.mxu0 0.0
        %2375 = vmatprep.subr.mxu0 0.0
        %2376 = vmatpush1.msra.mxu0 0.0
        %2377 = vmatprep.subr.mxu0 0.0
        %2378 = vmatpush1.msra.mxu0 0.0
        %2379 = vmatprep.subr.mxu0 0.0
        %2380 = vmatpush1.msra.mxu0 0.0
        %2381 = vmatprep.subr.mxu0 0.0
        %2382 = vmatpush1.msra.mxu0 0.0
        %2383 = vmatprep.subr.mxu0 0.0
        %2384 = vmatpush1.msra.mxu0 0.0
        %2385 = vmatprep.mubr.f32.mxu0 0.0
        %2386 = vmatmul.mubr.f32.gmra.mrb[0].mxu0 %v2299
        %v2387 = vpop.f32.mrb[0].mxu0
        %v2388 = vadd.f32 %v2320, %v2387
        %v2389 = vpop.f32.mrb[0].mxu0
        %2390 = vmatprep.mubr.f32.mxu0 0.0
        %2391 = vmatmul.mubr.f32.gmra.mrb[0].mxu0 %v2300
        %v2392 = vpop.f32.mrb[0].mxu0
        %v2393 = vadd.f32 %v2320, %v2392
        %v2394 = vpop.f32.mrb[0].mxu0
        %2395 = vdwg.mxu0
        %v2396 = vadd.f32 %v2189, %v2388
        %v2397 = vadd.f32 %v2190, %v2393
        %v2398 = vsel %vm612, %v2396, 0.0
        %2399 = vadd.xlane.f32.xlu0 %v2398
        %v2400 = vpop.xlane.xlu0 %2399
        %v2401 = vsel %vm612, %v2397, 0.0
        %2402 = vadd.xlane.f32.xlu0 %v2401
        %v2403 = vpop.xlane.xlu0 %2402
        %v2404 = vmul.f32 %v2400, %v2158
        %v2405 = vmul.f32 %v2403, %v2158
        %v2406 = vsub.f32 %v2396, %v2404
        %v2407 = vsub.f32 %v2397, %v2405
        %v2408 = vmul.f32 %v2406, %v2406
        %v2409 = vmul.f32 %v2407, %v2407
        %v2410 = vsel %vm612, %v2408, 0.0
        %2411 = vadd.xlane.f32.xlu0 %v2410
        %v2412 = vpop.xlane.xlu0 %2411
        %v2413 = vsel %vm612, %v2409, 0.0
        %2414 = vadd.xlane.f32.xlu0 %v2413
        %v2415 = vpop.xlane.xlu0 %2414
        %v2416 = vmul.f32 %v2412, %v2158
        %v2417 = vmul.f32 %v2415, %v2158
        %v2418 = vadd.f32 %v2416, 1e-12
        %v2419 = vadd.f32 %v2417, 1e-12
        %v2420 = vrsqrt.pop %v2418
        %v2421 = vrsqrt.pop %v2419
        %v2422 = vmul.f32 %v2406, %v2420
        %v2423 = vmul.f32 %v2407, %v2421
        %v2424 = vlaneseq
        %v2425 = vshrl.u32 %v2424, 7
        %v2426 = vsub.s32 4, %v2425
        %v2427 = vrot.slane %v586, %v2426
        %v2428 = vmul.f32 %v2422, %v2427
        %v2429 = vmul.f32 %v2423, %v2427
        %v2430 = vlaneseq
        %v2431 = vshrl.u32 %v2430, 7
        %v2432 = vsub.s32 5, %v2431
        %v2433 = vrot.slane %v586, %v2432
        %v2434 = vadd.f32 %v2428, %v2433
        %v2435 = vadd.f32 %v2429, %v2433
        %2436 = vst.msk [vmem:[#allocation2] sm:$0xff] %vm612, %v2434
        %2437 = vst.msk [vmem:[#allocation2 + $0x8] sm:$0xff] %vm612, %v2435
        %v2438 = vld [vmem:[#allocation3] sm:$0x3]
        %v2439 = vld [vmem:[%s524] sm:$0xff]
        %v2440 = vld [vmem:[%s524 + $0x8] sm:$0xff]
        %v2441 = vld [vmem:[%s524 + $0x10] sm:$0xff]
        %v2442 = vld [vmem:[%s524 + $0x18] sm:$0xff]
        %v2445 = vrot.slane %v2435, 7
        %vm2446 = vcmask 1041409
        %v2447 = vsel %vm2446, %v2445, %v2434
        %v2448 = vsel %vm612, %v2447, 0
        %2450 = vmatprep.subr.mxu0 0.0
        %2451 = vmatpush1.msra.mxu0 %v2439
        %2452 = vmatprep.subr.mxu0 0.0
        %2453 = vmatpush1.msra.mxu0 %v2440
        %2454 = vmatprep.subr.mxu0 0.0
        %2455 = vmatpush1.msra.mxu0 %v2441
        %2456 = vmatprep.subr.mxu0 0.0
        %2457 = vmatpush1.msra.mxu0 %v2442
        %2458 = vmatprep.subr.mxu0 0.0
        %2459 = vmatpush1.msra.mxu0 0.0
        %2460 = vmatprep.subr.mxu0 0.0
        %2461 = vmatpush1.msra.mxu0 0.0
        %2462 = vmatprep.subr.mxu0 0.0
        %2463 = vmatpush1.msra.mxu0 0.0
        %2464 = vmatprep.subr.mxu0 0.0
        %2465 = vmatpush1.msra.mxu0 0.0
        %2466 = vmatprep.subr.mxu0 0.0
        %2467 = vmatpush1.msra.mxu0 0.0
        %2468 = vmatprep.subr.mxu0 0.0
        %2469 = vmatpush1.msra.mxu0 0.0
        %2470 = vmatprep.subr.mxu0 0.0
        %2471 = vmatpush1.msra.mxu0 0.0
        %2472 = vmatprep.subr.mxu0 0.0
        %2473 = vmatpush1.msra.mxu0 0.0
        %2474 = vmatprep.subr.mxu0 0.0
        %2475 = vmatpush1.msra.mxu0 0.0
        %2476 = vmatprep.subr.mxu0 0.0
        %2477 = vmatpush1.msra.mxu0 0.0
        %2478 = vmatprep.subr.mxu0 0.0
        %2479 = vmatpush1.msra.mxu0 0.0
        %2480 = vmatprep.subr.mxu0 0.0
        %2481 = vmatpush1.msra.mxu0 0.0
        %2482 = vmatprep.subr.mxu0 0.0
        %2483 = vmatpush1.msra.mxu0 0.0
        %2484 = vmatprep.subr.mxu0 0.0
        %2485 = vmatpush1.msra.mxu0 0.0
        %2486 = vmatprep.subr.mxu0 0.0
        %2487 = vmatpush1.msra.mxu0 0.0
        %2488 = vmatprep.subr.mxu0 0.0
        %2489 = vmatpush1.msra.mxu0 0.0
        %2490 = vmatprep.subr.mxu0 0.0
        %2491 = vmatpush1.msra.mxu0 0.0
        %2492 = vmatprep.subr.mxu0 0.0
        %2493 = vmatpush1.msra.mxu0 0.0
        %2494 = vmatprep.subr.mxu0 0.0
        %2495 = vmatpush1.msra.mxu0 0.0
        %2496 = vmatprep.subr.mxu0 0.0
        %2497 = vmatpush1.msra.mxu0 0.0
        %2498 = vmatprep.subr.mxu0 0.0
        %2499 = vmatpush1.msra.mxu0 0.0
        %2500 = vmatprep.subr.mxu0 0.0
        %2501 = vmatpush1.msra.mxu0 0.0
        %2502 = vmatprep.subr.mxu0 0.0
        %2503 = vmatpush1.msra.mxu0 0.0
        %2504 = vmatprep.subr.mxu0 0.0
        %2505 = vmatpush1.msra.mxu0 0.0
        %2506 = vmatprep.subr.mxu0 0.0
        %2507 = vmatpush1.msra.mxu0 0.0
        %2508 = vmatprep.subr.mxu0 0.0
        %2509 = vmatpush1.msra.mxu0 0.0
        %2510 = vmatprep.subr.mxu0 0.0
        %2511 = vmatpush1.msra.mxu0 0.0
        %2512 = vmatprep.subr.mxu0 0.0
        %2513 = vmatpush1.msra.mxu0 0.0
        %2514 = vmatprep.mubr.f32.mxu0 0.0
        %2515 = vmatmul.mubr.f32.gmra.mrb[0].mxu0 %v2448
        %v2516 = vpop.f32.mrb[0].mxu0
        %v2517 = vadd.f32 0.0, %v2516
        %v2518 = vpop.f32.mrb[0].mxu0
        %2519 = vdwg.mxu0
        %v2520 = vadd.f32 %v2438, %v2517
        %vm2521 = vcmask 17408
        %2522 = vst.msk [vmem:[#allocation3] sm:$0x3] %vm2521, %v2520
        // Predicated region
        $region73: #{bert_classifier_forward.1} parent=67 // pred_check
          %p2523 = pneg %p329
        $region74: #{bert_classifier_forward.1} parent=67 // pred_check_branch
          %2525 = sbr.rel (%p2523) target = $region76
        $region75: #{bert_classifier_forward.1} parent=67 // pred_region
          %s2527 = ssub.s32 32, 32
          %2528 = vsyncadd [#allocation4], %s2527
          %s2530 = sshll.u32 [#allocation3], 4
          %s2531 = int_to_ptr.vmem [resolvable:$true] %s2530
          %2533 = dma.vmem_to_hbm [thread:$0]  %s2531, 32, %s12, [#allocation4]
        $region76: #{bert_classifier_forward.1} parent=67 // pred_fallthru
          _
        // Predicated region
        $region77: #{bert_classifier_forward.1} parent=67 // pred_check
          %p2534 = pneg %p329
        $region78: #{bert_classifier_forward.1} parent=67 // pred_check_branch
          %2536 = sbr.rel (%p2534) target = $region80
        $region79: #{bert_classifier_forward.1} parent=67 // pred_region
          %2537 = dma.done [#allocation4], 32
        $region80: #{bert_classifier_forward.1} parent=67 // pred_fallthru
          _
      $region68: #{bert_classifier_forward.1} parent=5 // pred_fallthru
        _
      %p2538 = scmp.le.s32.totalorder 2, %s19
      // Predicated region
      $region81: #{bert_classifier_forward.1} parent=5 // pred_check
        %p2539 = pneg %p2538
      $region82: #{bert_classifier_forward.1} parent=5 // pred_check_branch
        %2541 = sbr.rel (%p2539) target = $region84
      $region83: #{bert_classifier_forward.1} parent=5 // pred_region
        %s2542 = ssub.s32 %s19, 2
      $region84: #{bert_classifier_forward.1} parent=5 // pred_fallthru
        _
    $region6: #{bert_classifier_forward.1} parent=1 // loop_footer
      %s23 = sadd.s32 1, %s19
    $region7: #{bert_classifier_forward.1} parent=1 // loop_footer_branch
      %18 = sbr.rel target = $region3
    $region8: #{bert_classifier_forward.1} parent=1 // loop_exit
      _
    %2543 = vsyncpa [#allocation4], 1
    %s2544 = scalar_lea.sflag [#allocation4], 1
    %2545 = vsyncpa %s2544, 1

</llo_original>
